<compile_context>
chip_gen: v7x
topology: tpu7x:2x2x1
jax: 0.10.0
libtpu: 0.0.40
codegen_flags: <defaults>
</compile_context>

<pallas_src>
import functools
import math

import jax
import jax.numpy as jnp
from jax.experimental import pallas as pl
from jax.experimental.pallas import tpu as pltpu


def _layer_norm(z, gamma, beta, eps=1e-6):
    # Module explicitly uses nn.LayerNorm(..., eps=1e-06).
    mu = jnp.mean(z, axis=-1, keepdims=True)
    var = jnp.mean((z - mu) ** 2, axis=-1, keepdims=True)
    return (z - mu) * jax.lax.rsqrt(var + eps) * gamma + beta


def encoder_layer_kernel(
    x_ref, mask_ref,
    wq_ref, wk_ref, wv_ref, bq_ref, bk_ref, bv_ref,
    wo_ref, bo_ref,
    ln1_g_ref, ln1_b_ref,
    w1_ref, b1_ref, w2_ref, b2_ref,
    ln2_g_ref, ln2_b_ref,
    o_ref,
    *, num_heads, head_dim, tb, seq, compute_dtype,
):
    E = num_heads * head_dim
    TB, S = tb, seq
    M = TB * S

    # Fold the batch tile into the matmul M dimension (TB*S rows).
    x = x_ref[...].reshape(M, E)          # f32 (kept for residuals / LayerNorm)
    xc = x.astype(compute_dtype)          # matmul operand dtype
    mask = mask_ref[...]                  # (S, S) additive float mask, f32

    # ---- Multi-head self-attention (nn.MultiheadAttention semantics) ----
    # Per-head weights arrive pre-transposed & head-split:
    #   wq/wk/wv: (H, E, hd)   (1/sqrt(hd) folded into wq, bq)
    #   wo:       (H, hd, E)   (per-head slice of out_proj.weight.T)
    att_acc = jnp.zeros((M, E), jnp.float32)
    for h in range(num_heads):            # static small loop; no lane shuffles
        q = jnp.dot(xc, wq_ref[h], preferred_element_type=jnp.float32) + bq_ref[h]
        k = jnp.dot(xc, wk_ref[h], preferred_element_type=jnp.float32) + bk_ref[h]
        v = jnp.dot(xc, wv_ref[h], preferred_element_type=jnp.float32) + bv_ref[h]

        # (TB*S, hd) -> (TB, S, hd): pure leading-dim split (S is a multiple of 8).
        q3 = q.reshape(TB, S, head_dim).astype(compute_dtype)
        k3 = k.reshape(TB, S, head_dim).astype(compute_dtype)
        v3 = v.reshape(TB, S, head_dim).astype(compute_dtype)

        # Batched over TB in one dot_general: scores (TB, S, S).
        scores = jax.lax.dot_general(
            q3, k3, (((2,), (2,)), ((0,), (0,))),
            preferred_element_type=jnp.float32) + mask

        # Softmax over keys (f32), normalization via EUP reciprocal.
        mx = jnp.max(scores, axis=-1, keepdims=True)
        p = jnp.exp(scores - mx)
        l = jnp.sum(p, axis=-1, keepdims=True)
        attn = p * pl.reciprocal(l, approx=True)

        ctx = jax.lax.dot_general(
            attn.astype(compute_dtype), v3, (((2,), (1,)), ((0,), (0,))),
            preferred_element_type=jnp.float32)            # (TB, S, hd)

        # Per-head slice of out_proj, accumulated => no head concat needed.
        att_acc = att_acc + jnp.dot(
            ctx.reshape(M, head_dim).astype(compute_dtype), wo_ref[h],
            preferred_element_type=jnp.float32)

    att_out = att_acc + bo_ref[...]

    # ---- residual + LayerNorm 1 ----
    out1 = _layer_norm(x + att_out, ln1_g_ref[...], ln1_b_ref[...])

    # ---- Positionwise feed-forward: Linear(E,256) -> relu -> Linear(256,E) ----
    h1 = jnp.maximum(
        jnp.dot(out1.astype(compute_dtype), w1_ref[...],
                preferred_element_type=jnp.float32) + b1_ref[...],
        0.0)
    ffn = jnp.dot(h1.astype(compute_dtype), w2_ref[...],
                  preferred_element_type=jnp.float32) + b2_ref[...]

    # ---- residual + LayerNorm 2 ----
    out2 = _layer_norm(out1 + ffn, ln2_g_ref[...], ln2_b_ref[...])
    o_ref[...] = out2.reshape(TB, S, E)


def _pick_tb(B, S, row_budget=256):
    """Largest divisor of B such that TB*S stays within the row budget."""
    upper = max(1, min(B, row_budget // max(S, 1)))
    for cand in range(upper, 0, -1):
        if B % cand == 0:
            return cand
    return 1


def transformer_encoder_layer(x, src_mask, params, *, num_heads,
                              matmul_dtype=jnp.float32):
    B, S, E = x.shape
    head_dim = E // num_heads
    D_HID = params["w1"].shape[0]
    scale = 1.0 / math.sqrt(head_dim)

    # ---- one-time host-side weight preparation (no .T inside the kernel) ----
    wq, wk, wv = (params["in_w"][:E], params["in_w"][E:2 * E], params["in_w"][2 * E:])
    bq, bk, bv = (params["in_b"][:E], params["in_b"][E:2 * E], params["in_b"][2 * E:])

    def head_split(w):  # (E_out, E_in) -> (H, E_in, hd): per-head columns of w.T
        return jnp.transpose(w.T.reshape(E, num_heads, head_dim), (1, 0, 2))

    wq_h = (head_split(wq) * scale).astype(matmul_dtype)
    wk_h = head_split(wk).astype(matmul_dtype)
    wv_h = head_split(wv).astype(matmul_dtype)
    bq_h = (bq * scale).reshape(num_heads, 1, head_dim).astype(jnp.float32)
    bk_h = bk.reshape(num_heads, 1, head_dim).astype(jnp.float32)
    bv_h = bv.reshape(num_heads, 1, head_dim).astype(jnp.float32)
    wo_h = params["out_w"].T.reshape(num_heads, head_dim, E).astype(matmul_dtype)
    bo = params["out_b"].reshape(1, E).astype(jnp.float32)
    w1_t = params["w1"].T.astype(matmul_dtype)     # (E, D_HID)
    b1 = params["b1"].reshape(1, D_HID).astype(jnp.float32)
    w2_t = params["w2"].T.astype(matmul_dtype)     # (D_HID, E)
    b2 = params["b2"].reshape(1, E).astype(jnp.float32)
    ln1_g = params["ln1_g"].reshape(1, E).astype(jnp.float32)
    ln1_b = params["ln1_b"].reshape(1, E).astype(jnp.float32)
    ln2_g = params["ln2_g"].reshape(1, E).astype(jnp.float32)
    ln2_b = params["ln2_b"].reshape(1, E).astype(jnp.float32)

    TB = _pick_tb(B, S)
    grid = (B // TB,)

    # Weight/bias/LN inputs are grid-invariant; they could additionally be
    # single-buffered (pipeline_mode) to save VMEM at production sizes (v7x).
    full = lambda shp: pl.BlockSpec(shp, lambda b: (0,) * len(shp))

    kernel = functools.partial(
        encoder_layer_kernel,
        num_heads=num_heads, head_dim=head_dim, tb=TB, seq=S,
        compute_dtype=matmul_dtype)

    return pl.pallas_call(
        kernel,
        out_shape=jax.ShapeDtypeStruct((B, S, E), jnp.float32),
        grid=grid,
        in_specs=[
            pl.BlockSpec((TB, S, E), lambda b: (b, 0, 0)),   # x
            full((S, S)),                                    # additive mask
            full((num_heads, E, head_dim)),                  # Wq (scaled, per-head)
            full((num_heads, E, head_dim)),                  # Wk
            full((num_heads, E, head_dim)),                  # Wv
            full((num_heads, 1, head_dim)),                  # bq (scaled)
            full((num_heads, 1, head_dim)),                  # bk
            full((num_heads, 1, head_dim)),                  # bv
            full((num_heads, head_dim, E)),                  # out_proj weight (per-head)
            full((1, E)),                                    # out_proj bias
            full((1, E)),                                    # ln1 gamma
            full((1, E)),                                    # ln1 beta
            full((E, D_HID)),                                # w_1.weight (pre-T)
            full((1, D_HID)),                                # w_1.bias
            full((D_HID, E)),                                # w_2.weight (pre-T)
            full((1, E)),                                    # w_2.bias
            full((1, E)),                                    # ln2 gamma
            full((1, E)),                                    # ln2 beta
        ],
        out_specs=pl.BlockSpec((TB, S, E), lambda b: (b, 0, 0)),
        compiler_params=pltpu.CompilerParams(
            dimension_semantics=("parallel",)),
    )(
        x, src_mask,
        wq_h, wk_h, wv_h, bq_h, bk_h, bv_h,
        wo_h, bo,
        ln1_g, ln1_b,
        w1_t, b1, w2_t, b2,
        ln2_g, ln2_b,
    )


# ---------------- pure-JAX reference (for correctness check) ----------------
def reference(x, src_mask, params, *, num_heads):
    B, S, E = x.shape
    hd = E // num_heads
    qkv = jnp.einsum("bse,fe->bsf", x, params["in_w"]) + params["in_b"]
    q, k, v = qkv[..., :E], qkv[..., E:2 * E], qkv[..., 2 * E:]
    reshape_h = lambda t: t.reshape(B, S, num_heads, hd).transpose(0, 2, 1, 3)
    q, k, v = reshape_h(q), reshape_h(k), reshape_h(v)
    scores = jnp.einsum("bhqd,bhkd->bhqk", q, k) / (hd ** 0.5) + src_mask
    attn = jax.nn.softmax(scores, axis=-1)
    att = jnp.einsum("bhqk,bhkd->bhqd", attn, v).transpose(0, 2, 1, 3).reshape(B, S, E)
    att = jnp.einsum("bse,fe->bsf", att, params["out_w"]) + params["out_b"]

    def ln(z, g, b):
        mu = z.mean(-1, keepdims=True)
        var = ((z - mu) ** 2).mean(-1, keepdims=True)
        return (z - mu) / jnp.sqrt(var + 1e-6) * g + b

    out1 = ln(x + att, params["ln1_g"], params["ln1_b"])
    h = jax.nn.relu(jnp.einsum("bse,fe->bsf", out1, params["w1"]) + params["b1"])
    ffn = jnp.einsum("bsf,ef->bse", h, params["w2"]) + params["b2"]
    return ln(out1 + ffn, params["ln2_g"], params["ln2_b"])


if __name__ == "__main__":
    B, S, E = 2, 8, 32
    NUM_HEADS = 2
    D_HID = 256

    key = jax.random.PRNGKey(0)
    ks = jax.random.split(key, 12)
    params = {
        "in_w": jax.random.normal(ks[0], (3 * E, E), jnp.float32) * 0.05,
        "in_b": jax.random.normal(ks[1], (3 * E,), jnp.float32) * 0.05,
        "out_w": jax.random.normal(ks[2], (E, E), jnp.float32) * 0.05,
        "out_b": jax.random.normal(ks[3], (E,), jnp.float32) * 0.05,
        "ln1_g": jnp.ones((E,), jnp.float32),
        "ln1_b": jnp.zeros((E,), jnp.float32),
        "w1": jax.random.normal(ks[4], (D_HID, E), jnp.float32) * 0.05,
        "b1": jax.random.normal(ks[5], (D_HID,), jnp.float32) * 0.05,
        "w2": jax.random.normal(ks[6], (E, D_HID), jnp.float32) * 0.05,
        "b2": jax.random.normal(ks[7], (E,), jnp.float32) * 0.05,
        "ln2_g": jnp.ones((E,), jnp.float32),
        "ln2_b": jnp.zeros((E,), jnp.float32),
    }

    x = jax.random.normal(ks[8], (B, S, E), jnp.float32)
    # float additive attention mask (causal-style): 0 where allowed, -1e9 where blocked
    row = jnp.arange(S)[:, None]
    col = jnp.arange(S)[None, :]
    src_mask = jnp.where(col <= row, 0.0, -1e9).astype(jnp.float32)

    ref = reference(x, src_mask, params, num_heads=NUM_HEADS)

    # f32 matmul path (exact semantics; approx reciprocal only deviation)
    out = transformer_encoder_layer(x, src_mask, params, num_heads=NUM_HEADS,
                                    matmul_dtype=jnp.float32)
    out = jax.block_until_ready(out)
    assert out.shape == (B, S, E)
    assert jnp.allclose(out, ref, rtol=2e-3, atol=2e-3), \
        float(jnp.max(jnp.abs(out - ref)))

    # bf16 matmul path (v6e/v7x MXU throughput), f32 accumulation & norms
    out_bf16 = transformer_encoder_layer(x, src_mask, params, num_heads=NUM_HEADS,
                                         matmul_dtype=jnp.bfloat16)
    out_bf16 = jax.block_until_ready(out_bf16)
    assert jnp.allclose(out_bf16, ref, rtol=5e-2, atol=5e-2), \
        float(jnp.max(jnp.abs(out_bf16 - ref)))

    print("KERNEL_OK")
</pallas_src>

<mosaic_0001>
module attributes {stable_mosaic.version = 11 : i64} {
  func.func @encoder_layer_kernel(%arg0: i32, %arg1: memref<2x8x32xf32, #tpu.memory_space<vmem>>, %arg2: memref<8x8xf32, #tpu.memory_space<vmem>>, %arg3: memref<2x32x16xf32, #tpu.memory_space<vmem>>, %arg4: memref<2x32x16xf32, #tpu.memory_space<vmem>>, %arg5: memref<2x32x16xf32, #tpu.memory_space<vmem>>, %arg6: memref<2x1x16xf32, #tpu.memory_space<vmem>>, %arg7: memref<2x1x16xf32, #tpu.memory_space<vmem>>, %arg8: memref<2x1x16xf32, #tpu.memory_space<vmem>>, %arg9: memref<2x16x32xf32, #tpu.memory_space<vmem>>, %arg10: memref<1x32xf32, #tpu.memory_space<vmem>>, %arg11: memref<1x32xf32, #tpu.memory_space<vmem>>, %arg12: memref<1x32xf32, #tpu.memory_space<vmem>>, %arg13: memref<32x256xf32, #tpu.memory_space<vmem>>, %arg14: memref<1x256xf32, #tpu.memory_space<vmem>>, %arg15: memref<256x32xf32, #tpu.memory_space<vmem>>, %arg16: memref<1x32xf32, #tpu.memory_space<vmem>>, %arg17: memref<1x32xf32, #tpu.memory_space<vmem>>, %arg18: memref<1x32xf32, #tpu.memory_space<vmem>>, %arg19: memref<2x8x32xf32, #tpu.memory_space<vmem>>) attributes {dimension_semantics = [#tpu.dimension_semantics<parallel>], iteration_bounds = array<i64: 1>, scalar_prefetch = 0 : i64, scratch_operands = 0 : i64, tpu.core_type = #tpu.core_type<tc>, window_params = [{transform_indices = @transform_0, window_bounds = array<i64: 2, 8, 32>}, {pipeline_mode = #tpu.pipeline_mode<synchronous>, transform_indices = @transform_1, window_bounds = array<i64: 8, 8>}, {pipeline_mode = #tpu.pipeline_mode<synchronous>, transform_indices = @transform_2, window_bounds = array<i64: 2, 32, 16>}, {pipeline_mode = #tpu.pipeline_mode<synchronous>, transform_indices = @transform_3, window_bounds = array<i64: 2, 32, 16>}, {pipeline_mode = #tpu.pipeline_mode<synchronous>, transform_indices = @transform_4, window_bounds = array<i64: 2, 32, 16>}, {pipeline_mode = #tpu.pipeline_mode<synchronous>, transform_indices = @transform_5, window_bounds = array<i64: 2, 1, 16>}, {pipeline_mode = #tpu.pipeline_mode<synchronous>, transform_indices = @transform_6, window_bounds = array<i64: 2, 1, 16>}, {pipeline_mode = #tpu.pipeline_mode<synchronous>, transform_indices = @transform_7, window_bounds = array<i64: 2, 1, 16>}, {pipeline_mode = #tpu.pipeline_mode<synchronous>, transform_indices = @transform_8, window_bounds = array<i64: 2, 16, 32>}, {pipeline_mode = #tpu.pipeline_mode<synchronous>, transform_indices = @transform_9, window_bounds = array<i64: 1, 32>}, {pipeline_mode = #tpu.pipeline_mode<synchronous>, transform_indices = @transform_10, window_bounds = array<i64: 1, 32>}, {pipeline_mode = #tpu.pipeline_mode<synchronous>, transform_indices = @transform_11, window_bounds = array<i64: 1, 32>}, {pipeline_mode = #tpu.pipeline_mode<synchronous>, transform_indices = @transform_12, window_bounds = array<i64: 32, 256>}, {pipeline_mode = #tpu.pipeline_mode<synchronous>, transform_indices = @transform_13, window_bounds = array<i64: 1, 256>}, {pipeline_mode = #tpu.pipeline_mode<synchronous>, transform_indices = @transform_14, window_bounds = array<i64: 256, 32>}, {pipeline_mode = #tpu.pipeline_mode<synchronous>, transform_indices = @transform_15, window_bounds = array<i64: 1, 32>}, {pipeline_mode = #tpu.pipeline_mode<synchronous>, transform_indices = @transform_16, window_bounds = array<i64: 1, 32>}, {pipeline_mode = #tpu.pipeline_mode<synchronous>, transform_indices = @transform_17, window_bounds = array<i64: 1, 32>}, {transform_indices = @transform_18, window_bounds = array<i64: 2, 8, 32>}]} {
    %c0 = arith.constant 0 : index
    %c0_0 = arith.constant 0 : index
    %c0_1 = arith.constant 0 : index
    %0 = vector.load %arg1[%c0, %c0_0, %c0_1] : memref<2x8x32xf32, #tpu.memory_space<vmem>>, vector<2x8x32xf32>
    %1 = vector.shape_cast %0 : vector<2x8x32xf32> to vector<16x32xf32>
    %c0_2 = arith.constant 0 : index
    %c0_3 = arith.constant 0 : index
    %2 = vector.load %arg2[%c0_2, %c0_3] : memref<8x8xf32, #tpu.memory_space<vmem>>, vector<8x8xf32>
    %cst = arith.constant 0.000000e+00 : f32
    %3 = vector.broadcast %cst : f32 to vector<16x32xf32>
    %c0_4 = arith.constant 0 : index
    %c0_5 = arith.constant 0 : index
    %c0_6 = arith.constant 0 : index
    %4 = vector.load %arg3[%c0_4, %c0_5, %c0_6] : memref<2x32x16xf32, #tpu.memory_space<vmem>>, vector<1x32x16xf32>
    %5 = vector.shape_cast %4 : vector<1x32x16xf32> to vector<32x16xf32>
    %cst_7 = arith.constant dense<0.000000e+00> : vector<16x16xf32>
    %6 = tpu.matmul %1, %5, %cst_7 {dimension_numbers = #tpu.dot_dimension_numbers<[1], [0], [0], [1], [0, 0, 1, 1], [], []>} : vector<16x32xf32>, vector<32x16xf32>, vector<16x16xf32> -> vector<16x16xf32>
    %c0_8 = arith.constant 0 : index
    %c0_9 = arith.constant 0 : index
    %c0_10 = arith.constant 0 : index
    %7 = vector.load %arg6[%c0_8, %c0_9, %c0_10] : memref<2x1x16xf32, #tpu.memory_space<vmem>>, vector<1x1x16xf32>
    %8 = vector.shape_cast %7 : vector<1x1x16xf32> to vector<1x16xf32>
    %9 = vector.broadcast %8 : vector<1x16xf32> to vector<16x16xf32>
    %10 = arith.addf %6, %9 : vector<16x16xf32>
    %c0_11 = arith.constant 0 : index
    %c0_12 = arith.constant 0 : index
    %c0_13 = arith.constant 0 : index
    %11 = vector.load %arg4[%c0_11, %c0_12, %c0_13] : memref<2x32x16xf32, #tpu.memory_space<vmem>>, vector<1x32x16xf32>
    %12 = vector.shape_cast %11 : vector<1x32x16xf32> to vector<32x16xf32>
    %cst_14 = arith.constant dense<0.000000e+00> : vector<16x16xf32>
    %13 = tpu.matmul %1, %12, %cst_14 {dimension_numbers = #tpu.dot_dimension_numbers<[1], [0], [0], [1], [0, 0, 1, 1], [], []>} : vector<16x32xf32>, vector<32x16xf32>, vector<16x16xf32> -> vector<16x16xf32>
    %c0_15 = arith.constant 0 : index
    %c0_16 = arith.constant 0 : index
    %c0_17 = arith.constant 0 : index
    %14 = vector.load %arg7[%c0_15, %c0_16, %c0_17] : memref<2x1x16xf32, #tpu.memory_space<vmem>>, vector<1x1x16xf32>
    %15 = vector.shape_cast %14 : vector<1x1x16xf32> to vector<1x16xf32>
    %16 = vector.broadcast %15 : vector<1x16xf32> to vector<16x16xf32>
    %17 = arith.addf %13, %16 : vector<16x16xf32>
    %c0_18 = arith.constant 0 : index
    %c0_19 = arith.constant 0 : index
    %c0_20 = arith.constant 0 : index
    %18 = vector.load %arg5[%c0_18, %c0_19, %c0_20] : memref<2x32x16xf32, #tpu.memory_space<vmem>>, vector<1x32x16xf32>
    %19 = vector.shape_cast %18 : vector<1x32x16xf32> to vector<32x16xf32>
    %cst_21 = arith.constant dense<0.000000e+00> : vector<16x16xf32>
    %20 = tpu.matmul %1, %19, %cst_21 {dimension_numbers = #tpu.dot_dimension_numbers<[1], [0], [0], [1], [0, 0, 1, 1], [], []>} : vector<16x32xf32>, vector<32x16xf32>, vector<16x16xf32> -> vector<16x16xf32>
    %c0_22 = arith.constant 0 : index
    %c0_23 = arith.constant 0 : index
    %c0_24 = arith.constant 0 : index
    %21 = vector.load %arg8[%c0_22, %c0_23, %c0_24] : memref<2x1x16xf32, #tpu.memory_space<vmem>>, vector<1x1x16xf32>
    %22 = vector.shape_cast %21 : vector<1x1x16xf32> to vector<1x16xf32>
    %23 = vector.broadcast %22 : vector<1x16xf32> to vector<16x16xf32>
    %24 = arith.addf %20, %23 : vector<16x16xf32>
    %25 = vector.shape_cast %10 : vector<16x16xf32> to vector<2x8x16xf32>
    %26 = vector.shape_cast %17 : vector<16x16xf32> to vector<2x8x16xf32>
    %27 = vector.shape_cast %24 : vector<16x16xf32> to vector<2x8x16xf32>
    %cst_25 = arith.constant dense<0.000000e+00> : vector<2x8x8xf32>
    %28 = tpu.matmul %25, %26, %cst_25 {dimension_numbers = #tpu.dot_dimension_numbers<[2], [2], [1], [1], [0, 0, 0, 1, 1, 1], [0], [0]>} : vector<2x8x16xf32>, vector<2x8x16xf32>, vector<2x8x8xf32> -> vector<2x8x8xf32>
    %29 = vector.shape_cast %2 : vector<8x8xf32> to vector<1x8x8xf32>
    %30 = vector.broadcast %29 : vector<1x8x8xf32> to vector<2x8x8xf32>
    %31 = arith.addf %28, %30 : vector<2x8x8xf32>
    %cst_26 = arith.constant dense<0xFF800000> : vector<2x8xf32>
    %32 = vector.multi_reduction <maximumf>, %31, %cst_26 [2] : vector<2x8x8xf32> to vector<2x8xf32>
    %33 = vector.shape_cast %32 : vector<2x8xf32> to vector<2x8x1xf32>
    %34 = vector.broadcast %33 : vector<2x8x1xf32> to vector<2x8x8xf32>
    %35 = arith.subf %31, %34 : vector<2x8x8xf32>
    %36 = math.exp %35 : vector<2x8x8xf32>
    %cst_27 = arith.constant dense<0.000000e+00> : vector<2x8xf32>
    %37 = vector.multi_reduction <add>, %36, %cst_27 [2] : vector<2x8x8xf32> to vector<2x8xf32>
    %38 = vector.shape_cast %37 : vector<2x8xf32> to vector<2x8x1xf32>
    %39 = tpu.reciprocal %38 {approx = true} : vector<2x8x1xf32> -> vector<2x8x1xf32>
    %40 = vector.broadcast %39 : vector<2x8x1xf32> to vector<2x8x8xf32>
    %41 = arith.mulf %36, %40 : vector<2x8x8xf32>
    %cst_28 = arith.constant dense<0.000000e+00> : vector<2x8x16xf32>
    %42 = tpu.matmul %41, %27, %cst_28 {dimension_numbers = #tpu.dot_dimension_numbers<[2], [1], [1], [2], [0, 0, 0, 1, 1, 2], [0], [0]>} : vector<2x8x8xf32>, vector<2x8x16xf32>, vector<2x8x16xf32> -> vector<2x8x16xf32>
    %43 = vector.shape_cast %42 : vector<2x8x16xf32> to vector<16x16xf32>
    %c0_29 = arith.constant 0 : index
    %c0_30 = arith.constant 0 : index
    %c0_31 = arith.constant 0 : index
    %44 = vector.load %arg9[%c0_29, %c0_30, %c0_31] : memref<2x16x32xf32, #tpu.memory_space<vmem>>, vector<1x16x32xf32>
    %45 = vector.shape_cast %44 : vector<1x16x32xf32> to vector<16x32xf32>
    %cst_32 = arith.constant dense<0.000000e+00> : vector<16x32xf32>
    %46 = tpu.matmul %43, %45, %cst_32 {dimension_numbers = #tpu.dot_dimension_numbers<[1], [0], [0], [1], [0, 0, 1, 1], [], []>} : vector<16x16xf32>, vector<16x32xf32>, vector<16x32xf32> -> vector<16x32xf32>
    %47 = arith.addf %3, %46 : vector<16x32xf32>
    %c1 = arith.constant 1 : index
    %c0_33 = arith.constant 0 : index
    %c0_34 = arith.constant 0 : index
    %48 = vector.load %arg3[%c1, %c0_33, %c0_34] : memref<2x32x16xf32, #tpu.memory_space<vmem>>, vector<1x32x16xf32>
    %49 = vector.shape_cast %48 : vector<1x32x16xf32> to vector<32x16xf32>
    %cst_35 = arith.constant dense<0.000000e+00> : vector<16x16xf32>
    %50 = tpu.matmul %1, %49, %cst_35 {dimension_numbers = #tpu.dot_dimension_numbers<[1], [0], [0], [1], [0, 0, 1, 1], [], []>} : vector<16x32xf32>, vector<32x16xf32>, vector<16x16xf32> -> vector<16x16xf32>
    %c1_36 = arith.constant 1 : index
    %c0_37 = arith.constant 0 : index
    %c0_38 = arith.constant 0 : index
    %51 = vector.load %arg6[%c1_36, %c0_37, %c0_38] : memref<2x1x16xf32, #tpu.memory_space<vmem>>, vector<1x1x16xf32>
    %52 = vector.shape_cast %51 : vector<1x1x16xf32> to vector<1x16xf32>
    %53 = vector.broadcast %52 : vector<1x16xf32> to vector<16x16xf32>
    %54 = arith.addf %50, %53 : vector<16x16xf32>
    %c1_39 = arith.constant 1 : index
    %c0_40 = arith.constant 0 : index
    %c0_41 = arith.constant 0 : index
    %55 = vector.load %arg4[%c1_39, %c0_40, %c0_41] : memref<2x32x16xf32, #tpu.memory_space<vmem>>, vector<1x32x16xf32>
    %56 = vector.shape_cast %55 : vector<1x32x16xf32> to vector<32x16xf32>
    %cst_42 = arith.constant dense<0.000000e+00> : vector<16x16xf32>
    %57 = tpu.matmul %1, %56, %cst_42 {dimension_numbers = #tpu.dot_dimension_numbers<[1], [0], [0], [1], [0, 0, 1, 1], [], []>} : vector<16x32xf32>, vector<32x16xf32>, vector<16x16xf32> -> vector<16x16xf32>
    %c1_43 = arith.constant 1 : index
    %c0_44 = arith.constant 0 : index
    %c0_45 = arith.constant 0 : index
    %58 = vector.load %arg7[%c1_43, %c0_44, %c0_45] : memref<2x1x16xf32, #tpu.memory_space<vmem>>, vector<1x1x16xf32>
    %59 = vector.shape_cast %58 : vector<1x1x16xf32> to vector<1x16xf32>
    %60 = vector.broadcast %59 : vector<1x16xf32> to vector<16x16xf32>
    %61 = arith.addf %57, %60 : vector<16x16xf32>
    %c1_46 = arith.constant 1 : index
    %c0_47 = arith.constant 0 : index
    %c0_48 = arith.constant 0 : index
    %62 = vector.load %arg5[%c1_46, %c0_47, %c0_48] : memref<2x32x16xf32, #tpu.memory_space<vmem>>, vector<1x32x16xf32>
    %63 = vector.shape_cast %62 : vector<1x32x16xf32> to vector<32x16xf32>
    %cst_49 = arith.constant dense<0.000000e+00> : vector<16x16xf32>
    %64 = tpu.matmul %1, %63, %cst_49 {dimension_numbers = #tpu.dot_dimension_numbers<[1], [0], [0], [1], [0, 0, 1, 1], [], []>} : vector<16x32xf32>, vector<32x16xf32>, vector<16x16xf32> -> vector<16x16xf32>
    %c1_50 = arith.constant 1 : index
    %c0_51 = arith.constant 0 : index
    %c0_52 = arith.constant 0 : index
    %65 = vector.load %arg8[%c1_50, %c0_51, %c0_52] : memref<2x1x16xf32, #tpu.memory_space<vmem>>, vector<1x1x16xf32>
    %66 = vector.shape_cast %65 : vector<1x1x16xf32> to vector<1x16xf32>
    %67 = vector.broadcast %66 : vector<1x16xf32> to vector<16x16xf32>
    %68 = arith.addf %64, %67 : vector<16x16xf32>
    %69 = vector.shape_cast %54 : vector<16x16xf32> to vector<2x8x16xf32>
    %70 = vector.shape_cast %61 : vector<16x16xf32> to vector<2x8x16xf32>
    %71 = vector.shape_cast %68 : vector<16x16xf32> to vector<2x8x16xf32>
    %cst_53 = arith.constant dense<0.000000e+00> : vector<2x8x8xf32>
    %72 = tpu.matmul %69, %70, %cst_53 {dimension_numbers = #tpu.dot_dimension_numbers<[2], [2], [1], [1], [0, 0, 0, 1, 1, 1], [0], [0]>} : vector<2x8x16xf32>, vector<2x8x16xf32>, vector<2x8x8xf32> -> vector<2x8x8xf32>
    %73 = vector.shape_cast %2 : vector<8x8xf32> to vector<1x8x8xf32>
    %74 = vector.broadcast %73 : vector<1x8x8xf32> to vector<2x8x8xf32>
    %75 = arith.addf %72, %74 : vector<2x8x8xf32>
    %cst_54 = arith.constant dense<0xFF800000> : vector<2x8xf32>
    %76 = vector.multi_reduction <maximumf>, %75, %cst_54 [2] : vector<2x8x8xf32> to vector<2x8xf32>
    %77 = vector.shape_cast %76 : vector<2x8xf32> to vector<2x8x1xf32>
    %78 = vector.broadcast %77 : vector<2x8x1xf32> to vector<2x8x8xf32>
    %79 = arith.subf %75, %78 : vector<2x8x8xf32>
    %80 = math.exp %79 : vector<2x8x8xf32>
    %cst_55 = arith.constant dense<0.000000e+00> : vector<2x8xf32>
    %81 = vector.multi_reduction <add>, %80, %cst_55 [2] : vector<2x8x8xf32> to vector<2x8xf32>
    %82 = vector.shape_cast %81 : vector<2x8xf32> to vector<2x8x1xf32>
    %83 = tpu.reciprocal %82 {approx = true} : vector<2x8x1xf32> -> vector<2x8x1xf32>
    %84 = vector.broadcast %83 : vector<2x8x1xf32> to vector<2x8x8xf32>
    %85 = arith.mulf %80, %84 : vector<2x8x8xf32>
    %cst_56 = arith.constant dense<0.000000e+00> : vector<2x8x16xf32>
    %86 = tpu.matmul %85, %71, %cst_56 {dimension_numbers = #tpu.dot_dimension_numbers<[2], [1], [1], [2], [0, 0, 0, 1, 1, 2], [0], [0]>} : vector<2x8x8xf32>, vector<2x8x16xf32>, vector<2x8x16xf32> -> vector<2x8x16xf32>
    %87 = vector.shape_cast %86 : vector<2x8x16xf32> to vector<16x16xf32>
    %c1_57 = arith.constant 1 : index
    %c0_58 = arith.constant 0 : index
    %c0_59 = arith.constant 0 : index
    %88 = vector.load %arg9[%c1_57, %c0_58, %c0_59] : memref<2x16x32xf32, #tpu.memory_space<vmem>>, vector<1x16x32xf32>
    %89 = vector.shape_cast %88 : vector<1x16x32xf32> to vector<16x32xf32>
    %cst_60 = arith.constant dense<0.000000e+00> : vector<16x32xf32>
    %90 = tpu.matmul %87, %89, %cst_60 {dimension_numbers = #tpu.dot_dimension_numbers<[1], [0], [0], [1], [0, 0, 1, 1], [], []>} : vector<16x16xf32>, vector<16x32xf32>, vector<16x32xf32> -> vector<16x32xf32>
    %91 = arith.addf %47, %90 : vector<16x32xf32>
    %c0_61 = arith.constant 0 : index
    %c0_62 = arith.constant 0 : index
    %92 = vector.load %arg10[%c0_61, %c0_62] : memref<1x32xf32, #tpu.memory_space<vmem>>, vector<1x32xf32>
    %93 = vector.broadcast %92 : vector<1x32xf32> to vector<16x32xf32>
    %94 = arith.addf %91, %93 : vector<16x32xf32>
    %95 = arith.addf %1, %94 : vector<16x32xf32>
    %c0_63 = arith.constant 0 : index
    %c0_64 = arith.constant 0 : index
    %96 = vector.load %arg11[%c0_63, %c0_64] : memref<1x32xf32, #tpu.memory_space<vmem>>, vector<1x32xf32>
    %c0_65 = arith.constant 0 : index
    %c0_66 = arith.constant 0 : index
    %97 = vector.load %arg12[%c0_65, %c0_66] : memref<1x32xf32, #tpu.memory_space<vmem>>, vector<1x32xf32>
    %cst_67 = arith.constant dense<0.000000e+00> : vector<16xf32>
    %98 = vector.multi_reduction <add>, %95, %cst_67 [1] : vector<16x32xf32> to vector<16xf32>
    %99 = vector.shape_cast %98 : vector<16xf32> to vector<16x1xf32>
    %cst_68 = arith.constant 3.200000e+01 : f32
    %100 = vector.broadcast %cst_68 : f32 to vector<16x1xf32>
    %101 = arith.divf %99, %100 : vector<16x1xf32>
    %102 = vector.broadcast %101 : vector<16x1xf32> to vector<16x32xf32>
    %103 = arith.subf %95, %102 : vector<16x32xf32>
    %104 = arith.mulf %103, %103 : vector<16x32xf32>
    %cst_69 = arith.constant dense<0.000000e+00> : vector<16xf32>
    %105 = vector.multi_reduction <add>, %104, %cst_69 [1] : vector<16x32xf32> to vector<16xf32>
    %106 = vector.shape_cast %105 : vector<16xf32> to vector<16x1xf32>
    %cst_70 = arith.constant 3.200000e+01 : f32
    %107 = vector.broadcast %cst_70 : f32 to vector<16x1xf32>
    %108 = arith.divf %106, %107 : vector<16x1xf32>
    %109 = vector.broadcast %101 : vector<16x1xf32> to vector<16x32xf32>
    %110 = arith.subf %95, %109 : vector<16x32xf32>
    %cst_71 = arith.constant 9.99999997E-7 : f32
    %111 = vector.broadcast %cst_71 : f32 to vector<16x1xf32>
    %112 = arith.addf %108, %111 : vector<16x1xf32>
    %113 = math.rsqrt %112 : vector<16x1xf32>
    %114 = vector.broadcast %113 : vector<16x1xf32> to vector<16x32xf32>
    %115 = arith.mulf %110, %114 : vector<16x32xf32>
    %116 = vector.broadcast %96 : vector<1x32xf32> to vector<16x32xf32>
    %117 = arith.mulf %115, %116 : vector<16x32xf32>
    %118 = vector.broadcast %97 : vector<1x32xf32> to vector<16x32xf32>
    %119 = arith.addf %117, %118 : vector<16x32xf32>
    %c0_72 = arith.constant 0 : index
    %c0_73 = arith.constant 0 : index
    %120 = vector.load %arg13[%c0_72, %c0_73] : memref<32x256xf32, #tpu.memory_space<vmem>>, vector<32x256xf32>
    %cst_74 = arith.constant dense<0.000000e+00> : vector<16x256xf32>
    %121 = tpu.matmul %119, %120, %cst_74 {dimension_numbers = #tpu.dot_dimension_numbers<[1], [0], [0], [1], [0, 0, 1, 1], [], []>} : vector<16x32xf32>, vector<32x256xf32>, vector<16x256xf32> -> vector<16x256xf32>
    %c0_75 = arith.constant 0 : index
    %c0_76 = arith.constant 0 : index
    %122 = vector.load %arg14[%c0_75, %c0_76] : memref<1x256xf32, #tpu.memory_space<vmem>>, vector<1x256xf32>
    %123 = vector.broadcast %122 : vector<1x256xf32> to vector<16x256xf32>
    %124 = arith.addf %121, %123 : vector<16x256xf32>
    %cst_77 = arith.constant 0.000000e+00 : f32
    %125 = vector.broadcast %cst_77 : f32 to vector<16x256xf32>
    %126 = arith.maximumf %124, %125 : vector<16x256xf32>
    %c0_78 = arith.constant 0 : index
    %c0_79 = arith.constant 0 : index
    %127 = vector.load %arg15[%c0_78, %c0_79] : memref<256x32xf32, #tpu.memory_space<vmem>>, vector<256x32xf32>
    %cst_80 = arith.constant dense<0.000000e+00> : vector<16x32xf32>
    %128 = tpu.matmul %126, %127, %cst_80 {dimension_numbers = #tpu.dot_dimension_numbers<[1], [0], [0], [1], [0, 0, 1, 1], [], []>} : vector<16x256xf32>, vector<256x32xf32>, vector<16x32xf32> -> vector<16x32xf32>
    %c0_81 = arith.constant 0 : index
    %c0_82 = arith.constant 0 : index
    %129 = vector.load %arg16[%c0_81, %c0_82] : memref<1x32xf32, #tpu.memory_space<vmem>>, vector<1x32xf32>
    %130 = vector.broadcast %129 : vector<1x32xf32> to vector<16x32xf32>
    %131 = arith.addf %128, %130 : vector<16x32xf32>
    %132 = arith.addf %119, %131 : vector<16x32xf32>
    %c0_83 = arith.constant 0 : index
    %c0_84 = arith.constant 0 : index
    %133 = vector.load %arg17[%c0_83, %c0_84] : memref<1x32xf32, #tpu.memory_space<vmem>>, vector<1x32xf32>
    %c0_85 = arith.constant 0 : index
    %c0_86 = arith.constant 0 : index
    %134 = vector.load %arg18[%c0_85, %c0_86] : memref<1x32xf32, #tpu.memory_space<vmem>>, vector<1x32xf32>
    %cst_87 = arith.constant dense<0.000000e+00> : vector<16xf32>
    %135 = vector.multi_reduction <add>, %132, %cst_87 [1] : vector<16x32xf32> to vector<16xf32>
    %136 = vector.shape_cast %135 : vector<16xf32> to vector<16x1xf32>
    %cst_88 = arith.constant 3.200000e+01 : f32
    %137 = vector.broadcast %cst_88 : f32 to vector<16x1xf32>
    %138 = arith.divf %136, %137 : vector<16x1xf32>
    %139 = vector.broadcast %138 : vector<16x1xf32> to vector<16x32xf32>
    %140 = arith.subf %132, %139 : vector<16x32xf32>
    %141 = arith.mulf %140, %140 : vector<16x32xf32>
    %cst_89 = arith.constant dense<0.000000e+00> : vector<16xf32>
    %142 = vector.multi_reduction <add>, %141, %cst_89 [1] : vector<16x32xf32> to vector<16xf32>
    %143 = vector.shape_cast %142 : vector<16xf32> to vector<16x1xf32>
    %cst_90 = arith.constant 3.200000e+01 : f32
    %144 = vector.broadcast %cst_90 : f32 to vector<16x1xf32>
    %145 = arith.divf %143, %144 : vector<16x1xf32>
    %146 = vector.broadcast %138 : vector<16x1xf32> to vector<16x32xf32>
    %147 = arith.subf %132, %146 : vector<16x32xf32>
    %cst_91 = arith.constant 9.99999997E-7 : f32
    %148 = vector.broadcast %cst_91 : f32 to vector<16x1xf32>
    %149 = arith.addf %145, %148 : vector<16x1xf32>
    %150 = math.rsqrt %149 : vector<16x1xf32>
    %151 = vector.broadcast %150 : vector<16x1xf32> to vector<16x32xf32>
    %152 = arith.mulf %147, %151 : vector<16x32xf32>
    %153 = vector.broadcast %133 : vector<1x32xf32> to vector<16x32xf32>
    %154 = arith.mulf %152, %153 : vector<16x32xf32>
    %155 = vector.broadcast %134 : vector<1x32xf32> to vector<16x32xf32>
    %156 = arith.addf %154, %155 : vector<16x32xf32>
    %157 = vector.shape_cast %156 : vector<16x32xf32> to vector<2x8x32xf32>
    %c0_92 = arith.constant 0 : index
    %c0_93 = arith.constant 0 : index
    %c0_94 = arith.constant 0 : index
    %158 = vector.load %arg19[%c0_92, %c0_93, %c0_94] : memref<2x8x32xf32, #tpu.memory_space<vmem>>, vector<2x8x32xf32>
    tpu.vector_store %arg19[%c0_92, %c0_93, %c0_94], %157 {strides = array<i32>} : memref<2x8x32xf32, #tpu.memory_space<vmem>>, vector<2x8x32xf32>,
    return
  }
  func.func @transform_0(%arg0: i32) -> (i32, i32, i32) {
    %c0_i32 = arith.constant 0 : i32
    %c0_i32_0 = arith.constant 0 : i32
    %c0_i32_1 = arith.constant 0 : i32
    return %arg0, %c0_i32, %c0_i32_0 : i32, i32, i32
  }
  func.func @transform_1(%arg0: i32) -> (i32, i32) {
    %c0_i32 = arith.constant 0 : i32
    %c0_i32_0 = arith.constant 0 : i32
    %c0_i32_1 = arith.constant 0 : i32
    return %c0_i32, %c0_i32_0 : i32, i32
  }
  func.func @transform_2(%arg0: i32) -> (i32, i32, i32) {
    %c0_i32 = arith.constant 0 : i32
    %c0_i32_0 = arith.constant 0 : i32
    %c0_i32_1 = arith.constant 0 : i32
    %c0_i32_2 = arith.constant 0 : i32
    return %c0_i32, %c0_i32_0, %c0_i32_1 : i32, i32, i32
  }
  func.func @transform_3(%arg0: i32) -> (i32, i32, i32) {
    %c0_i32 = arith.constant 0 : i32
    %c0_i32_0 = arith.constant 0 : i32
    %c0_i32_1 = arith.constant 0 : i32
    %c0_i32_2 = arith.constant 0 : i32
    return %c0_i32, %c0_i32_0, %c0_i32_1 : i32, i32, i32
  }
  func.func @transform_4(%arg0: i32) -> (i32, i32, i32) {
    %c0_i32 = arith.constant 0 : i32
    %c0_i32_0 = arith.constant 0 : i32
    %c0_i32_1 = arith.constant 0 : i32
    %c0_i32_2 = arith.constant 0 : i32
    return %c0_i32, %c0_i32_0, %c0_i32_1 : i32, i32, i32
  }
  func.func @transform_5(%arg0: i32) -> (i32, i32, i32) {
    %c0_i32 = arith.constant 0 : i32
    %c0_i32_0 = arith.constant 0 : i32
    %c0_i32_1 = arith.constant 0 : i32
    %c0_i32_2 = arith.constant 0 : i32
    return %c0_i32, %c0_i32_0, %c0_i32_1 : i32, i32, i32
  }
  func.func @transform_6(%arg0: i32) -> (i32, i32, i32) {
    %c0_i32 = arith.constant 0 : i32
    %c0_i32_0 = arith.constant 0 : i32
    %c0_i32_1 = arith.constant 0 : i32
    %c0_i32_2 = arith.constant 0 : i32
    return %c0_i32, %c0_i32_0, %c0_i32_1 : i32, i32, i32
  }
  func.func @transform_7(%arg0: i32) -> (i32, i32, i32) {
    %c0_i32 = arith.constant 0 : i32
    %c0_i32_0 = arith.constant 0 : i32
    %c0_i32_1 = arith.constant 0 : i32
    %c0_i32_2 = arith.constant 0 : i32
    return %c0_i32, %c0_i32_0, %c0_i32_1 : i32, i32, i32
  }
  func.func @transform_8(%arg0: i32) -> (i32, i32, i32) {
    %c0_i32 = arith.constant 0 : i32
    %c0_i32_0 = arith.constant 0 : i32
    %c0_i32_1 = arith.constant 0 : i32
    %c0_i32_2 = arith.constant 0 : i32
    return %c0_i32, %c0_i32_0, %c0_i32_1 : i32, i32, i32
  }
  func.func @transform_9(%arg0: i32) -> (i32, i32) {
    %c0_i32 = arith.constant 0 : i32
    %c0_i32_0 = arith.constant 0 : i32
    %c0_i32_1 = arith.constant 0 : i32
    return %c0_i32, %c0_i32_0 : i32, i32
  }
  func.func @transform_10(%arg0: i32) -> (i32, i32) {
    %c0_i32 = arith.constant 0 : i32
    %c0_i32_0 = arith.constant 0 : i32
    %c0_i32_1 = arith.constant 0 : i32
    return %c0_i32, %c0_i32_0 : i32, i32
  }
  func.func @transform_11(%arg0: i32) -> (i32, i32) {
    %c0_i32 = arith.constant 0 : i32
    %c0_i32_0 = arith.constant 0 : i32
    %c0_i32_1 = arith.constant 0 : i32
    return %c0_i32, %c0_i32_0 : i32, i32
  }
  func.func @transform_12(%arg0: i32) -> (i32, i32) {
    %c0_i32 = arith.constant 0 : i32
    %c0_i32_0 = arith.constant 0 : i32
    %c0_i32_1 = arith.constant 0 : i32
    return %c0_i32, %c0_i32_0 : i32, i32
  }
  func.func @transform_13(%arg0: i32) -> (i32, i32) {
    %c0_i32 = arith.constant 0 : i32
    %c0_i32_0 = arith.constant 0 : i32
    %c0_i32_1 = arith.constant 0 : i32
    return %c0_i32, %c0_i32_0 : i32, i32
  }
  func.func @transform_14(%arg0: i32) -> (i32, i32) {
    %c0_i32 = arith.constant 0 : i32
    %c0_i32_0 = arith.constant 0 : i32
    %c0_i32_1 = arith.constant 0 : i32
    return %c0_i32, %c0_i32_0 : i32, i32
  }
  func.func @transform_15(%arg0: i32) -> (i32, i32) {
    %c0_i32 = arith.constant 0 : i32
    %c0_i32_0 = arith.constant 0 : i32
    %c0_i32_1 = arith.constant 0 : i32
    return %c0_i32, %c0_i32_0 : i32, i32
  }
  func.func @transform_16(%arg0: i32) -> (i32, i32) {
    %c0_i32 = arith.constant 0 : i32
    %c0_i32_0 = arith.constant 0 : i32
    %c0_i32_1 = arith.constant 0 : i32
    return %c0_i32, %c0_i32_0 : i32, i32
  }
  func.func @transform_17(%arg0: i32) -> (i32, i32) {
    %c0_i32 = arith.constant 0 : i32
    %c0_i32_0 = arith.constant 0 : i32
    %c0_i32_1 = arith.constant 0 : i32
    return %c0_i32, %c0_i32_0 : i32, i32
  }
  func.func @transform_18(%arg0: i32) -> (i32, i32, i32) {
    %c0_i32 = arith.constant 0 : i32
    %c0_i32_0 = arith.constant 0 : i32
    %c0_i32_1 = arith.constant 0 : i32
    return %arg0, %c0_i32, %c0_i32_0 : i32, i32, i32
  }
}

</mosaic_0001>

<llo_original>
// kernel: tpu_custom_call.1
$region0: #{tpu_custom_call.1}
  #allocation0 [shape = 'u32[]', space=smem, size = 0x4, offset = 0x4, fixed_abs, tag = 'smem constant byte address 0x4 - core index']
  #allocation1 [shape = 'u32[144,128]{1,0:T(1,128)}', space=vmem, size = 0x12000, scoped, tag = 'internal scratch']
  %s0 = inlined_call_operand.vmem [shape: f32[2,8,32], index: 0, kind: input, shape index: {}]
  %s1 = inlined_call_operand.vmem [shape: f32[8,8], index: 1, kind: input, shape index: {}]
  %s2 = inlined_call_operand.vmem [shape: f32[2,32,16], index: 2, kind: input, shape index: {}]
  %s3 = inlined_call_operand.vmem [shape: f32[2,32,16], index: 3, kind: input, shape index: {}]
  %s4 = inlined_call_operand.vmem [shape: f32[2,32,16], index: 4, kind: input, shape index: {}]
  %s5 = inlined_call_operand.vmem [shape: f32[2,1,16], index: 5, kind: input, shape index: {}]
  %s6 = inlined_call_operand.vmem [shape: f32[2,1,16], index: 6, kind: input, shape index: {}]
  %s7 = inlined_call_operand.vmem [shape: f32[2,1,16], index: 7, kind: input, shape index: {}]
  %s8 = inlined_call_operand.vmem [shape: f32[2,16,32], index: 8, kind: input, shape index: {}]
  %s9 = inlined_call_operand.vmem [shape: f32[1,32], index: 9, kind: input, shape index: {}]
  %s10 = inlined_call_operand.vmem [shape: f32[1,32], index: 10, kind: input, shape index: {}]
  %s11 = inlined_call_operand.vmem [shape: f32[1,32], index: 11, kind: input, shape index: {}]
  %s12 = inlined_call_operand.vmem [shape: f32[32,256], index: 12, kind: input, shape index: {}]
  %s13 = inlined_call_operand.vmem [shape: f32[1,256], index: 13, kind: input, shape index: {}]
  %s14 = inlined_call_operand.vmem [shape: f32[256,32], index: 14, kind: input, shape index: {}]
  %s15 = inlined_call_operand.vmem [shape: f32[1,32], index: 15, kind: input, shape index: {}]
  %s16 = inlined_call_operand.vmem [shape: f32[1,32], index: 16, kind: input, shape index: {}]
  %s17 = inlined_call_operand.vmem [shape: f32[1,32], index: 17, kind: input, shape index: {}]
  %s18 = inlined_call_operand.hbm [shape: f32[2,8,32], index: 18, kind: output, shape index: {}]
  %s19 = sld [smem:[#allocation0]]
  $region82: #{tpu_custom_call.1} parent=0
    _
  %s21 = ssub.s32 1, %s19
  %s22 = scalar_select 0, %s21, %s19
  $region1: #{tpu_custom_call.1} parent=0
    #allocation2 [shape = 'u8[8192]{0}', space=vmem, size = 0x2000, scoped, tag = 'output window, operand 0, single buffered']
    #allocation3 [shape = 's32[1]{0}', space=sflag, size = 0x4, scoped, tag = 'scoped memory for tpu_custom_call.1']
    %23 = vsyncpa [#allocation3], 0
    // Predicated region
    $region2: #{tpu_custom_call.1} parent=1 // pred_check
      _
    $region3: #{tpu_custom_call.1} parent=1 // pred_check_branch
      %25 = sbr.rel (0) target = $region5
    $region4: #{tpu_custom_call.1} parent=1 // pred_region
      _
    $region5: #{tpu_custom_call.1} parent=1 // pred_fallthru
      _
    // Predicated region
    $region6: #{tpu_custom_call.1} parent=1 // pred_check
      _
    $region7: #{tpu_custom_call.1} parent=1 // pred_check_branch
      %27 = sbr.rel (0) target = $region9
    $region8: #{tpu_custom_call.1} parent=1 // pred_region
      _
    $region9: #{tpu_custom_call.1} parent=1 // pred_fallthru
      _
    // Predicated region
    $region10: #{tpu_custom_call.1} parent=1 // pred_check
      _
    $region11: #{tpu_custom_call.1} parent=1 // pred_check_branch
      %29 = sbr.rel (0) target = $region13
    $region12: #{tpu_custom_call.1} parent=1 // pred_region
      _
    $region13: #{tpu_custom_call.1} parent=1 // pred_fallthru
      _
    // Predicated region
    $region14: #{tpu_custom_call.1} parent=1 // pred_check
      _
    $region15: #{tpu_custom_call.1} parent=1 // pred_check_branch
      %31 = sbr.rel (0) target = $region17
    $region16: #{tpu_custom_call.1} parent=1 // pred_region
      _
    $region17: #{tpu_custom_call.1} parent=1 // pred_fallthru
      _
    // Predicated region
    $region18: #{tpu_custom_call.1} parent=1 // pred_check
      _
    $region19: #{tpu_custom_call.1} parent=1 // pred_check_branch
      %33 = sbr.rel (0) target = $region21
    $region20: #{tpu_custom_call.1} parent=1 // pred_region
      _
    $region21: #{tpu_custom_call.1} parent=1 // pred_fallthru
      _
    // Predicated region
    $region22: #{tpu_custom_call.1} parent=1 // pred_check
      _
    $region23: #{tpu_custom_call.1} parent=1 // pred_check_branch
      %35 = sbr.rel (0) target = $region25
    $region24: #{tpu_custom_call.1} parent=1 // pred_region
      _
    $region25: #{tpu_custom_call.1} parent=1 // pred_fallthru
      _
    // Predicated region
    $region26: #{tpu_custom_call.1} parent=1 // pred_check
      _
    $region27: #{tpu_custom_call.1} parent=1 // pred_check_branch
      %37 = sbr.rel (0) target = $region29
    $region28: #{tpu_custom_call.1} parent=1 // pred_region
      _
    $region29: #{tpu_custom_call.1} parent=1 // pred_fallthru
      _
    // Predicated region
    $region30: #{tpu_custom_call.1} parent=1 // pred_check
      _
    $region31: #{tpu_custom_call.1} parent=1 // pred_check_branch
      %39 = sbr.rel (0) target = $region33
    $region32: #{tpu_custom_call.1} parent=1 // pred_region
      _
    $region33: #{tpu_custom_call.1} parent=1 // pred_fallthru
      _
    // Predicated region
    $region34: #{tpu_custom_call.1} parent=1 // pred_check
      _
    $region35: #{tpu_custom_call.1} parent=1 // pred_check_branch
      %41 = sbr.rel (0) target = $region37
    $region36: #{tpu_custom_call.1} parent=1 // pred_region
      _
    $region37: #{tpu_custom_call.1} parent=1 // pred_fallthru
      _
    // Predicated region
    $region38: #{tpu_custom_call.1} parent=1 // pred_check
      _
    $region39: #{tpu_custom_call.1} parent=1 // pred_check_branch
      %43 = sbr.rel (0) target = $region41
    $region40: #{tpu_custom_call.1} parent=1 // pred_region
      _
    $region41: #{tpu_custom_call.1} parent=1 // pred_fallthru
      _
    // Predicated region
    $region42: #{tpu_custom_call.1} parent=1 // pred_check
      _
    $region43: #{tpu_custom_call.1} parent=1 // pred_check_branch
      %45 = sbr.rel (0) target = $region45
    $region44: #{tpu_custom_call.1} parent=1 // pred_region
      _
    $region45: #{tpu_custom_call.1} parent=1 // pred_fallthru
      _
    // Predicated region
    $region46: #{tpu_custom_call.1} parent=1 // pred_check
      _
    $region47: #{tpu_custom_call.1} parent=1 // pred_check_branch
      %47 = sbr.rel (0) target = $region49
    $region48: #{tpu_custom_call.1} parent=1 // pred_region
      _
    $region49: #{tpu_custom_call.1} parent=1 // pred_fallthru
      _
    // Predicated region
    $region50: #{tpu_custom_call.1} parent=1 // pred_check
      _
    $region51: #{tpu_custom_call.1} parent=1 // pred_check_branch
      %49 = sbr.rel (0) target = $region53
    $region52: #{tpu_custom_call.1} parent=1 // pred_region
      _
    $region53: #{tpu_custom_call.1} parent=1 // pred_fallthru
      _
    // Predicated region
    $region54: #{tpu_custom_call.1} parent=1 // pred_check
      _
    $region55: #{tpu_custom_call.1} parent=1 // pred_check_branch
      %51 = sbr.rel (0) target = $region57
    $region56: #{tpu_custom_call.1} parent=1 // pred_region
      _
    $region57: #{tpu_custom_call.1} parent=1 // pred_fallthru
      _
    // Predicated region
    $region58: #{tpu_custom_call.1} parent=1 // pred_check
      _
    $region59: #{tpu_custom_call.1} parent=1 // pred_check_branch
      %53 = sbr.rel (0) target = $region61
    $region60: #{tpu_custom_call.1} parent=1 // pred_region
      _
    $region61: #{tpu_custom_call.1} parent=1 // pred_fallthru
      _
    // Predicated region
    $region62: #{tpu_custom_call.1} parent=1 // pred_check
      _
    $region63: #{tpu_custom_call.1} parent=1 // pred_check_branch
      %55 = sbr.rel (0) target = $region65
    $region64: #{tpu_custom_call.1} parent=1 // pred_region
      _
    $region65: #{tpu_custom_call.1} parent=1 // pred_fallthru
      _
    // Predicated region
    $region66: #{tpu_custom_call.1} parent=1 // pred_check
      _
    $region67: #{tpu_custom_call.1} parent=1 // pred_check_branch
      %57 = sbr.rel (0) target = $region69
    $region68: #{tpu_custom_call.1} parent=1 // pred_region
      _
    $region69: #{tpu_custom_call.1} parent=1 // pred_fallthru
      _
    // Predicated region
    $region70: #{tpu_custom_call.1} parent=1 // pred_check
      _
    $region71: #{tpu_custom_call.1} parent=1 // pred_check_branch
      %59 = sbr.rel (0) target = $region73
    $region72: #{tpu_custom_call.1} parent=1 // pred_region
      _
    $region73: #{tpu_custom_call.1} parent=1 // pred_fallthru
      _
    %v60 = vld [vmem:[%s0] sm:$0xff]
    %v61 = vld [vmem:[%s0 + $0x8] sm:$0xff]
    %v62 = vld [vmem:[%s1] sm:$0xff]
    %v63 = vld [vmem:[%s2] sm:$0xff]
    %v64 = vld [vmem:[%s2 + $0x8] sm:$0xff]
    %v65 = vld [vmem:[%s2 + $0x10] sm:$0xff]
    %v66 = vld [vmem:[%s2 + $0x18] sm:$0xff]
    %v67 = vld [vmem:[%s5] sm:$0x1]
    %v69 = vlaneseq
    %v70 = vshrl.u32 %v69, 7
    %v71 = vsub.s32 0, %v70
    %v72 = vrot.slane %v67, %v71
    %vm74 = vcmask 261120
    %v76 = vsel %vm74, %v60, 0
    %v79 = vsel %vm74, %v61, 0
    %81 = vmatprep.subr.mxu0 0.0
    %82 = vmatpush1.msra.mxu0 %v63
    %83 = vmatprep.subr.mxu0 0.0
    %84 = vmatpush1.msra.mxu0 %v64
    %85 = vmatprep.subr.mxu0 0.0
    %86 = vmatpush1.msra.mxu0 %v65
    %87 = vmatprep.subr.mxu0 0.0
    %88 = vmatpush1.msra.mxu0 %v66
    %89 = vmatprep.subr.mxu0 0.0
    %90 = vmatpush1.msra.mxu0 0.0
    %91 = vmatprep.subr.mxu0 0.0
    %92 = vmatpush1.msra.mxu0 0.0
    %93 = vmatprep.subr.mxu0 0.0
    %94 = vmatpush1.msra.mxu0 0.0
    %95 = vmatprep.subr.mxu0 0.0
    %96 = vmatpush1.msra.mxu0 0.0
    %97 = vmatprep.subr.mxu0 0.0
    %98 = vmatpush1.msra.mxu0 0.0
    %99 = vmatprep.subr.mxu0 0.0
    %100 = vmatpush1.msra.mxu0 0.0
    %101 = vmatprep.subr.mxu0 0.0
    %102 = vmatpush1.msra.mxu0 0.0
    %103 = vmatprep.subr.mxu0 0.0
    %104 = vmatpush1.msra.mxu0 0.0
    %105 = vmatprep.subr.mxu0 0.0
    %106 = vmatpush1.msra.mxu0 0.0
    %107 = vmatprep.subr.mxu0 0.0
    %108 = vmatpush1.msra.mxu0 0.0
    %109 = vmatprep.subr.mxu0 0.0
    %110 = vmatpush1.msra.mxu0 0.0
    %111 = vmatprep.subr.mxu0 0.0
    %112 = vmatpush1.msra.mxu0 0.0
    %113 = vmatprep.subr.mxu0 0.0
    %114 = vmatpush1.msra.mxu0 0.0
    %115 = vmatprep.subr.mxu0 0.0
    %116 = vmatpush1.msra.mxu0 0.0
    %117 = vmatprep.subr.mxu0 0.0
    %118 = vmatpush1.msra.mxu0 0.0
    %119 = vmatprep.subr.mxu0 0.0
    %120 = vmatpush1.msra.mxu0 0.0
    %121 = vmatprep.subr.mxu0 0.0
    %122 = vmatpush1.msra.mxu0 0.0
    %123 = vmatprep.subr.mxu0 0.0
    %124 = vmatpush1.msra.mxu0 0.0
    %125 = vmatprep.subr.mxu0 0.0
    %126 = vmatpush1.msra.mxu0 0.0
    %127 = vmatprep.subr.mxu0 0.0
    %128 = vmatpush1.msra.mxu0 0.0
    %129 = vmatprep.subr.mxu0 0.0
    %130 = vmatpush1.msra.mxu0 0.0
    %131 = vmatprep.subr.mxu0 0.0
    %132 = vmatpush1.msra.mxu0 0.0
    %133 = vmatprep.subr.mxu0 0.0
    %134 = vmatpush1.msra.mxu0 0.0
    %135 = vmatprep.subr.mxu0 0.0
    %136 = vmatpush1.msra.mxu0 0.0
    %137 = vmatprep.subr.mxu0 0.0
    %138 = vmatpush1.msra.mxu0 0.0
    %139 = vmatprep.subr.mxu0 0.0
    %140 = vmatpush1.msra.mxu0 0.0
    %141 = vmatprep.subr.mxu0 0.0
    %142 = vmatpush1.msra.mxu0 0.0
    %143 = vmatprep.subr.mxu0 0.0
    %144 = vmatpush1.msra.mxu0 0.0
    %145 = vmatprep.mubr.f32.mxu0 0.0
    %146 = vmatmul.mubr.f32.gmra.mrb[0].mxu0 %v76
    %v147 = vpop.f32.mrb[0].mxu0
    %v148 = vadd.f32 %v72, %v147
    %v149 = vpop.f32.mrb[0].mxu0
    %150 = vmatprep.mubr.f32.mxu0 0.0
    %151 = vmatmul.mubr.f32.gmra.mrb[0].mxu0 %v79
    %v152 = vpop.f32.mrb[0].mxu0
    %v153 = vadd.f32 %v72, %v152
    %v154 = vpop.f32.mrb[0].mxu0
    %155 = vdwg.mxu0
    %v156 = vld [vmem:[%s3] sm:$0xff]
    %v157 = vld [vmem:[%s3 + $0x8] sm:$0xff]
    %v158 = vld [vmem:[%s3 + $0x10] sm:$0xff]
    %v159 = vld [vmem:[%s3 + $0x18] sm:$0xff]
    %v160 = vld [vmem:[%s6] sm:$0x1]
    %v162 = vlaneseq
    %v163 = vshrl.u32 %v162, 7
    %v164 = vsub.s32 0, %v163
    %v165 = vrot.slane %v160, %v164
    %167 = vmatprep.subr.mxu0 0.0
    %168 = vmatpush1.msra.mxu0 %v156
    %169 = vmatprep.subr.mxu0 0.0
    %170 = vmatpush1.msra.mxu0 %v157
    %171 = vmatprep.subr.mxu0 0.0
    %172 = vmatpush1.msra.mxu0 %v158
    %173 = vmatprep.subr.mxu0 0.0
    %174 = vmatpush1.msra.mxu0 %v159
    %175 = vmatprep.subr.mxu0 0.0
    %176 = vmatpush1.msra.mxu0 0.0
    %177 = vmatprep.subr.mxu0 0.0
    %178 = vmatpush1.msra.mxu0 0.0
    %179 = vmatprep.subr.mxu0 0.0
    %180 = vmatpush1.msra.mxu0 0.0
    %181 = vmatprep.subr.mxu0 0.0
    %182 = vmatpush1.msra.mxu0 0.0
    %183 = vmatprep.subr.mxu0 0.0
    %184 = vmatpush1.msra.mxu0 0.0
    %185 = vmatprep.subr.mxu0 0.0
    %186 = vmatpush1.msra.mxu0 0.0
    %187 = vmatprep.subr.mxu0 0.0
    %188 = vmatpush1.msra.mxu0 0.0
    %189 = vmatprep.subr.mxu0 0.0
    %190 = vmatpush1.msra.mxu0 0.0
    %191 = vmatprep.subr.mxu0 0.0
    %192 = vmatpush1.msra.mxu0 0.0
    %193 = vmatprep.subr.mxu0 0.0
    %194 = vmatpush1.msra.mxu0 0.0
    %195 = vmatprep.subr.mxu0 0.0
    %196 = vmatpush1.msra.mxu0 0.0
    %197 = vmatprep.subr.mxu0 0.0
    %198 = vmatpush1.msra.mxu0 0.0
    %199 = vmatprep.subr.mxu0 0.0
    %200 = vmatpush1.msra.mxu0 0.0
    %201 = vmatprep.subr.mxu0 0.0
    %202 = vmatpush1.msra.mxu0 0.0
    %203 = vmatprep.subr.mxu0 0.0
    %204 = vmatpush1.msra.mxu0 0.0
    %205 = vmatprep.subr.mxu0 0.0
    %206 = vmatpush1.msra.mxu0 0.0
    %207 = vmatprep.subr.mxu0 0.0
    %208 = vmatpush1.msra.mxu0 0.0
    %209 = vmatprep.subr.mxu0 0.0
    %210 = vmatpush1.msra.mxu0 0.0
    %211 = vmatprep.subr.mxu0 0.0
    %212 = vmatpush1.msra.mxu0 0.0
    %213 = vmatprep.subr.mxu0 0.0
    %214 = vmatpush1.msra.mxu0 0.0
    %215 = vmatprep.subr.mxu0 0.0
    %216 = vmatpush1.msra.mxu0 0.0
    %217 = vmatprep.subr.mxu0 0.0
    %218 = vmatpush1.msra.mxu0 0.0
    %219 = vmatprep.subr.mxu0 0.0
    %220 = vmatpush1.msra.mxu0 0.0
    %221 = vmatprep.subr.mxu0 0.0
    %222 = vmatpush1.msra.mxu0 0.0
    %223 = vmatprep.subr.mxu0 0.0
    %224 = vmatpush1.msra.mxu0 0.0
    %225 = vmatprep.subr.mxu0 0.0
    %226 = vmatpush1.msra.mxu0 0.0
    %227 = vmatprep.subr.mxu0 0.0
    %228 = vmatpush1.msra.mxu0 0.0
    %229 = vmatprep.subr.mxu0 0.0
    %230 = vmatpush1.msra.mxu0 0.0
    %231 = vmatprep.mubr.f32.mxu0 0.0
    %232 = vmatmul.mubr.f32.gmra.mrb[0].mxu0 %v76
    %v233 = vpop.f32.mrb[0].mxu0
    %v234 = vadd.f32 %v165, %v233
    %v235 = vpop.f32.mrb[0].mxu0
    %236 = vmatprep.mubr.f32.mxu0 0.0
    %237 = vmatmul.mubr.f32.gmra.mrb[0].mxu0 %v79
    %v238 = vpop.f32.mrb[0].mxu0
    %v239 = vadd.f32 %v165, %v238
    %v240 = vpop.f32.mrb[0].mxu0
    %241 = vdwg.mxu0
    %v242 = vld [vmem:[%s4] sm:$0xff]
    %v243 = vld [vmem:[%s4 + $0x8] sm:$0xff]
    %v244 = vld [vmem:[%s4 + $0x10] sm:$0xff]
    %v245 = vld [vmem:[%s4 + $0x18] sm:$0xff]
    %v246 = vld [vmem:[%s7] sm:$0x1]
    %v248 = vlaneseq
    %v249 = vshrl.u32 %v248, 7
    %v250 = vsub.s32 0, %v249
    %v251 = vrot.slane %v246, %v250
    %253 = vmatprep.subr.mxu0 0.0
    %254 = vmatpush1.msra.mxu0 %v242
    %255 = vmatprep.subr.mxu0 0.0
    %256 = vmatpush1.msra.mxu0 %v243
    %257 = vmatprep.subr.mxu0 0.0
    %258 = vmatpush1.msra.mxu0 %v244
    %259 = vmatprep.subr.mxu0 0.0
    %260 = vmatpush1.msra.mxu0 %v245
    %261 = vmatprep.subr.mxu0 0.0
    %262 = vmatpush1.msra.mxu0 0.0
    %263 = vmatprep.subr.mxu0 0.0
    %264 = vmatpush1.msra.mxu0 0.0
    %265 = vmatprep.subr.mxu0 0.0
    %266 = vmatpush1.msra.mxu0 0.0
    %267 = vmatprep.subr.mxu0 0.0
    %268 = vmatpush1.msra.mxu0 0.0
    %269 = vmatprep.subr.mxu0 0.0
    %270 = vmatpush1.msra.mxu0 0.0
    %271 = vmatprep.subr.mxu0 0.0
    %272 = vmatpush1.msra.mxu0 0.0
    %273 = vmatprep.subr.mxu0 0.0
    %274 = vmatpush1.msra.mxu0 0.0
    %275 = vmatprep.subr.mxu0 0.0
    %276 = vmatpush1.msra.mxu0 0.0
    %277 = vmatprep.subr.mxu0 0.0
    %278 = vmatpush1.msra.mxu0 0.0
    %279 = vmatprep.subr.mxu0 0.0
    %280 = vmatpush1.msra.mxu0 0.0
    %281 = vmatprep.subr.mxu0 0.0
    %282 = vmatpush1.msra.mxu0 0.0
    %283 = vmatprep.subr.mxu0 0.0
    %284 = vmatpush1.msra.mxu0 0.0
    %285 = vmatprep.subr.mxu0 0.0
    %286 = vmatpush1.msra.mxu0 0.0
    %287 = vmatprep.subr.mxu0 0.0
    %288 = vmatpush1.msra.mxu0 0.0
    %289 = vmatprep.subr.mxu0 0.0
    %290 = vmatpush1.msra.mxu0 0.0
    %291 = vmatprep.subr.mxu0 0.0
    %292 = vmatpush1.msra.mxu0 0.0
    %293 = vmatprep.subr.mxu0 0.0
    %294 = vmatpush1.msra.mxu0 0.0
    %295 = vmatprep.subr.mxu0 0.0
    %296 = vmatpush1.msra.mxu0 0.0
    %297 = vmatprep.subr.mxu0 0.0
    %298 = vmatpush1.msra.mxu0 0.0
    %299 = vmatprep.subr.mxu0 0.0
    %300 = vmatpush1.msra.mxu0 0.0
    %301 = vmatprep.subr.mxu0 0.0
    %302 = vmatpush1.msra.mxu0 0.0
    %303 = vmatprep.subr.mxu0 0.0
    %304 = vmatpush1.msra.mxu0 0.0
    %305 = vmatprep.subr.mxu0 0.0
    %306 = vmatpush1.msra.mxu0 0.0
    %307 = vmatprep.subr.mxu0 0.0
    %308 = vmatpush1.msra.mxu0 0.0
    %309 = vmatprep.subr.mxu0 0.0
    %310 = vmatpush1.msra.mxu0 0.0
    %311 = vmatprep.subr.mxu0 0.0
    %312 = vmatpush1.msra.mxu0 0.0
    %313 = vmatprep.subr.mxu0 0.0
    %314 = vmatpush1.msra.mxu0 0.0
    %315 = vmatprep.subr.mxu0 0.0
    %316 = vmatpush1.msra.mxu0 0.0
    %317 = vmatprep.mubr.f32.mxu0 0.0
    %318 = vmatmul.mubr.f32.gmra.mrb[0].mxu0 %v76
    %v319 = vpop.f32.mrb[0].mxu0
    %v320 = vadd.f32 %v251, %v319
    %v321 = vpop.f32.mrb[0].mxu0
    %322 = vmatprep.mubr.f32.mxu0 0.0
    %323 = vmatmul.mubr.f32.gmra.mrb[0].mxu0 %v79
    %v324 = vpop.f32.mrb[0].mxu0
    %v325 = vadd.f32 %v251, %v324
    %v326 = vpop.f32.mrb[0].mxu0
    %327 = vdwg.mxu0
    %vm328 = vcmask 130048
    %v330 = vsel %vm328, %v148, 0
    %v333 = vsel %vm328, %v234, 0
    %335 = vmatprep.subr.mxu0 0.0
    %336 = vmatpush1.xpose.msra.mxu0 %v333
    %337 = vmatprep.subr.mxu0 0.0
    %338 = vmatpush1.xpose.msra.mxu0 0.0
    %339 = vmatprep.subr.mxu0 0.0
    %340 = vmatpush1.xpose.msra.mxu0 0.0
    %341 = vmatprep.subr.mxu0 0.0
    %342 = vmatpush1.xpose.msra.mxu0 0.0
    %343 = vmatprep.subr.mxu0 0.0
    %344 = vmatpush1.xpose.msra.mxu0 0.0
    %345 = vmatprep.subr.mxu0 0.0
    %346 = vmatpush1.xpose.msra.mxu0 0.0
    %347 = vmatprep.subr.mxu0 0.0
    %348 = vmatpush1.xpose.msra.mxu0 0.0
    %349 = vmatprep.subr.mxu0 0.0
    %350 = vmatpush1.xpose.msra.mxu0 0.0
    %351 = vmatprep.subr.mxu0 0.0
    %352 = vmatpush1.xpose.msra.mxu0 0.0
    %353 = vmatprep.subr.mxu0 0.0
    %354 = vmatpush1.xpose.msra.mxu0 0.0
    %355 = vmatprep.subr.mxu0 0.0
    %356 = vmatpush1.xpose.msra.mxu0 0.0
    %357 = vmatprep.subr.mxu0 0.0
    %358 = vmatpush1.xpose.msra.mxu0 0.0
    %359 = vmatprep.subr.mxu0 0.0
    %360 = vmatpush1.xpose.msra.mxu0 0.0
    %361 = vmatprep.subr.mxu0 0.0
    %362 = vmatpush1.xpose.msra.mxu0 0.0
    %363 = vmatprep.subr.mxu0 0.0
    %364 = vmatpush1.xpose.msra.mxu0 0.0
    %365 = vmatprep.subr.mxu0 0.0
    %366 = vmatpush1.xpose.msra.mxu0 0.0
    %367 = vmatprep.subr.mxu0 0.0
    %368 = vmatpush1.xpose.msra.mxu0 0.0
    %369 = vmatprep.subr.mxu0 0.0
    %370 = vmatpush1.xpose.msra.mxu0 0.0
    %371 = vmatprep.subr.mxu0 0.0
    %372 = vmatpush1.xpose.msra.mxu0 0.0
    %373 = vmatprep.subr.mxu0 0.0
    %374 = vmatpush1.xpose.msra.mxu0 0.0
    %375 = vmatprep.subr.mxu0 0.0
    %376 = vmatpush1.xpose.msra.mxu0 0.0
    %377 = vmatprep.subr.mxu0 0.0
    %378 = vmatpush1.xpose.msra.mxu0 0.0
    %379 = vmatprep.subr.mxu0 0.0
    %380 = vmatpush1.xpose.msra.mxu0 0.0
    %381 = vmatprep.subr.mxu0 0.0
    %382 = vmatpush1.xpose.msra.mxu0 0.0
    %383 = vmatprep.subr.mxu0 0.0
    %384 = vmatpush1.xpose.msra.mxu0 0.0
    %385 = vmatprep.subr.mxu0 0.0
    %386 = vmatpush1.xpose.msra.mxu0 0.0
    %387 = vmatprep.subr.mxu0 0.0
    %388 = vmatpush1.xpose.msra.mxu0 0.0
    %389 = vmatprep.subr.mxu0 0.0
    %390 = vmatpush1.xpose.msra.mxu0 0.0
    %391 = vmatprep.subr.mxu0 0.0
    %392 = vmatpush1.xpose.msra.mxu0 0.0
    %393 = vmatprep.subr.mxu0 0.0
    %394 = vmatpush1.xpose.msra.mxu0 0.0
    %395 = vmatprep.subr.mxu0 0.0
    %396 = vmatpush1.xpose.msra.mxu0 0.0
    %397 = vmatprep.subr.mxu0 0.0
    %398 = vmatpush1.xpose.msra.mxu0 0.0
    %399 = vmatprep.mubr.f32.mxu0 0.0
    %400 = vmatmul.mubr.f32.gmra.mrb[0].mxu0 %v330
    %v401 = vpop.f32.mrb[0].mxu0
    %v402 = vadd.f32 %v62, %v401
    %v403 = vpop.f32.mrb[0].mxu0
    %404 = vdwg.mxu0
    %v406 = vsel %vm328, %v153, 0
    %v409 = vsel %vm328, %v239, 0
    %411 = vmatprep.subr.mxu0 0.0
    %412 = vmatpush1.xpose.msra.mxu0 %v409
    %413 = vmatprep.subr.mxu0 0.0
    %414 = vmatpush1.xpose.msra.mxu0 0.0
    %415 = vmatprep.subr.mxu0 0.0
    %416 = vmatpush1.xpose.msra.mxu0 0.0
    %417 = vmatprep.subr.mxu0 0.0
    %418 = vmatpush1.xpose.msra.mxu0 0.0
    %419 = vmatprep.subr.mxu0 0.0
    %420 = vmatpush1.xpose.msra.mxu0 0.0
    %421 = vmatprep.subr.mxu0 0.0
    %422 = vmatpush1.xpose.msra.mxu0 0.0
    %423 = vmatprep.subr.mxu0 0.0
    %424 = vmatpush1.xpose.msra.mxu0 0.0
    %425 = vmatprep.subr.mxu0 0.0
    %426 = vmatpush1.xpose.msra.mxu0 0.0
    %427 = vmatprep.subr.mxu0 0.0
    %428 = vmatpush1.xpose.msra.mxu0 0.0
    %429 = vmatprep.subr.mxu0 0.0
    %430 = vmatpush1.xpose.msra.mxu0 0.0
    %431 = vmatprep.subr.mxu0 0.0
    %432 = vmatpush1.xpose.msra.mxu0 0.0
    %433 = vmatprep.subr.mxu0 0.0
    %434 = vmatpush1.xpose.msra.mxu0 0.0
    %435 = vmatprep.subr.mxu0 0.0
    %436 = vmatpush1.xpose.msra.mxu0 0.0
    %437 = vmatprep.subr.mxu0 0.0
    %438 = vmatpush1.xpose.msra.mxu0 0.0
    %439 = vmatprep.subr.mxu0 0.0
    %440 = vmatpush1.xpose.msra.mxu0 0.0
    %441 = vmatprep.subr.mxu0 0.0
    %442 = vmatpush1.xpose.msra.mxu0 0.0
    %443 = vmatprep.subr.mxu0 0.0
    %444 = vmatpush1.xpose.msra.mxu0 0.0
    %445 = vmatprep.subr.mxu0 0.0
    %446 = vmatpush1.xpose.msra.mxu0 0.0
    %447 = vmatprep.subr.mxu0 0.0
    %448 = vmatpush1.xpose.msra.mxu0 0.0
    %449 = vmatprep.subr.mxu0 0.0
    %450 = vmatpush1.xpose.msra.mxu0 0.0
    %451 = vmatprep.subr.mxu0 0.0
    %452 = vmatpush1.xpose.msra.mxu0 0.0
    %453 = vmatprep.subr.mxu0 0.0
    %454 = vmatpush1.xpose.msra.mxu0 0.0
    %455 = vmatprep.subr.mxu0 0.0
    %456 = vmatpush1.xpose.msra.mxu0 0.0
    %457 = vmatprep.subr.mxu0 0.0
    %458 = vmatpush1.xpose.msra.mxu0 0.0
    %459 = vmatprep.subr.mxu0 0.0
    %460 = vmatpush1.xpose.msra.mxu0 0.0
    %461 = vmatprep.subr.mxu0 0.0
    %462 = vmatpush1.xpose.msra.mxu0 0.0
    %463 = vmatprep.subr.mxu0 0.0
    %464 = vmatpush1.xpose.msra.mxu0 0.0
    %465 = vmatprep.subr.mxu0 0.0
    %466 = vmatpush1.xpose.msra.mxu0 0.0
    %467 = vmatprep.subr.mxu0 0.0
    %468 = vmatpush1.xpose.msra.mxu0 0.0
    %469 = vmatprep.subr.mxu0 0.0
    %470 = vmatpush1.xpose.msra.mxu0 0.0
    %471 = vmatprep.subr.mxu0 0.0
    %472 = vmatpush1.xpose.msra.mxu0 0.0
    %473 = vmatprep.subr.mxu0 0.0
    %474 = vmatpush1.xpose.msra.mxu0 0.0
    %475 = vmatprep.mubr.f32.mxu0 0.0
    %476 = vmatmul.mubr.f32.gmra.mrb[0].mxu0 %v406
    %v477 = vpop.f32.mrb[0].mxu0
    %v478 = vadd.f32 %v62, %v477
    %v479 = vpop.f32.mrb[0].mxu0
    %480 = vdwg.mxu0
    %vm481 = vcmask 64512
    %v482 = vsel %vm481, %v402, -inf
    %483 = vmax.xlane.f32.xlu0 %v482
    %v484 = vpop.xlane.xlu0 %483
    %v485 = vsel %vm481, %v478, -inf
    %486 = vmax.xlane.f32.xlu0 %v485
    %v487 = vpop.xlane.xlu0 %486
    %v488 = vsub.f32 %v402, %v484
    %v489 = vsub.f32 %v478, %v487
    %v490 = vmul.f32 %v488, 1.442695
    %v491 = vpow.pop %v490
    %v492 = vmul.f32 %v489, 1.442695
    %v493 = vpow.pop %v492
    %v494 = vsel %vm481, %v491, 0.0
    %495 = vadd.xlane.f32.xlu0 %v494
    %v496 = vpop.xlane.xlu0 %495
    %v497 = vsel %vm481, %v493, 0.0
    %498 = vadd.xlane.f32.xlu0 %v497
    %v499 = vpop.xlane.xlu0 %498
    %v500 = vrcp.pop %v496
    %v501 = vrcp.pop %v499
    %v502 = vmul.f32 %v491, %v500
    %v503 = vmul.f32 %v493, %v501
    %v505 = vsel %vm481, %v502, 0
    %507 = vmatprep.subr.mxu0 0.0
    %508 = vmatpush1.msra.mxu0 %v320
    %509 = vmatprep.subr.mxu0 0.0
    %510 = vmatpush1.msra.mxu0 0.0
    %511 = vmatprep.subr.mxu0 0.0
    %512 = vmatpush1.msra.mxu0 0.0
    %513 = vmatprep.subr.mxu0 0.0
    %514 = vmatpush1.msra.mxu0 0.0
    %515 = vmatprep.subr.mxu0 0.0
    %516 = vmatpush1.msra.mxu0 0.0
    %517 = vmatprep.subr.mxu0 0.0
    %518 = vmatpush1.msra.mxu0 0.0
    %519 = vmatprep.subr.mxu0 0.0
    %520 = vmatpush1.msra.mxu0 0.0
    %521 = vmatprep.subr.mxu0 0.0
    %522 = vmatpush1.msra.mxu0 0.0
    %523 = vmatprep.subr.mxu0 0.0
    %524 = vmatpush1.msra.mxu0 0.0
    %525 = vmatprep.subr.mxu0 0.0
    %526 = vmatpush1.msra.mxu0 0.0
    %527 = vmatprep.subr.mxu0 0.0
    %528 = vmatpush1.msra.mxu0 0.0
    %529 = vmatprep.subr.mxu0 0.0
    %530 = vmatpush1.msra.mxu0 0.0
    %531 = vmatprep.subr.mxu0 0.0
    %532 = vmatpush1.msra.mxu0 0.0
    %533 = vmatprep.subr.mxu0 0.0
    %534 = vmatpush1.msra.mxu0 0.0
    %535 = vmatprep.subr.mxu0 0.0
    %536 = vmatpush1.msra.mxu0 0.0
    %537 = vmatprep.subr.mxu0 0.0
    %538 = vmatpush1.msra.mxu0 0.0
    %539 = vmatprep.subr.mxu0 0.0
    %540 = vmatpush1.msra.mxu0 0.0
    %541 = vmatprep.subr.mxu0 0.0
    %542 = vmatpush1.msra.mxu0 0.0
    %543 = vmatprep.subr.mxu0 0.0
    %544 = vmatpush1.msra.mxu0 0.0
    %545 = vmatprep.subr.mxu0 0.0
    %546 = vmatpush1.msra.mxu0 0.0
    %547 = vmatprep.subr.mxu0 0.0
    %548 = vmatpush1.msra.mxu0 0.0
    %549 = vmatprep.subr.mxu0 0.0
    %550 = vmatpush1.msra.mxu0 0.0
    %551 = vmatprep.subr.mxu0 0.0
    %552 = vmatpush1.msra.mxu0 0.0
    %553 = vmatprep.subr.mxu0 0.0
    %554 = vmatpush1.msra.mxu0 0.0
    %555 = vmatprep.subr.mxu0 0.0
    %556 = vmatpush1.msra.mxu0 0.0
    %557 = vmatprep.subr.mxu0 0.0
    %558 = vmatpush1.msra.mxu0 0.0
    %559 = vmatprep.subr.mxu0 0.0
    %560 = vmatpush1.msra.mxu0 0.0
    %561 = vmatprep.subr.mxu0 0.0
    %562 = vmatpush1.msra.mxu0 0.0
    %563 = vmatprep.subr.mxu0 0.0
    %564 = vmatpush1.msra.mxu0 0.0
    %565 = vmatprep.subr.mxu0 0.0
    %566 = vmatpush1.msra.mxu0 0.0
    %567 = vmatprep.subr.mxu0 0.0
    %568 = vmatpush1.msra.mxu0 0.0
    %569 = vmatprep.subr.mxu0 0.0
    %570 = vmatpush1.msra.mxu0 0.0
    %571 = vmatprep.mubr.f32.mxu0 0.0
    %572 = vmatmul.mubr.f32.gmra.mrb[0].mxu0 %v505
    %v573 = vpop.f32.mrb[0].mxu0
    %v574 = vadd.f32 0.0, %v573
    %v575 = vpop.f32.mrb[0].mxu0
    %576 = vdwg.mxu0
    %v578 = vsel %vm481, %v503, 0
    %580 = vmatprep.subr.mxu0 0.0
    %581 = vmatpush1.msra.mxu0 %v325
    %582 = vmatprep.subr.mxu0 0.0
    %583 = vmatpush1.msra.mxu0 0.0
    %584 = vmatprep.subr.mxu0 0.0
    %585 = vmatpush1.msra.mxu0 0.0
    %586 = vmatprep.subr.mxu0 0.0
    %587 = vmatpush1.msra.mxu0 0.0
    %588 = vmatprep.subr.mxu0 0.0
    %589 = vmatpush1.msra.mxu0 0.0
    %590 = vmatprep.subr.mxu0 0.0
    %591 = vmatpush1.msra.mxu0 0.0
    %592 = vmatprep.subr.mxu0 0.0
    %593 = vmatpush1.msra.mxu0 0.0
    %594 = vmatprep.subr.mxu0 0.0
    %595 = vmatpush1.msra.mxu0 0.0
    %596 = vmatprep.subr.mxu0 0.0
    %597 = vmatpush1.msra.mxu0 0.0
    %598 = vmatprep.subr.mxu0 0.0
    %599 = vmatpush1.msra.mxu0 0.0
    %600 = vmatprep.subr.mxu0 0.0
    %601 = vmatpush1.msra.mxu0 0.0
    %602 = vmatprep.subr.mxu0 0.0
    %603 = vmatpush1.msra.mxu0 0.0
    %604 = vmatprep.subr.mxu0 0.0
    %605 = vmatpush1.msra.mxu0 0.0
    %606 = vmatprep.subr.mxu0 0.0
    %607 = vmatpush1.msra.mxu0 0.0
    %608 = vmatprep.subr.mxu0 0.0
    %609 = vmatpush1.msra.mxu0 0.0
    %610 = vmatprep.subr.mxu0 0.0
    %611 = vmatpush1.msra.mxu0 0.0
    %612 = vmatprep.subr.mxu0 0.0
    %613 = vmatpush1.msra.mxu0 0.0
    %614 = vmatprep.subr.mxu0 0.0
    %615 = vmatpush1.msra.mxu0 0.0
    %616 = vmatprep.subr.mxu0 0.0
    %617 = vmatpush1.msra.mxu0 0.0
    %618 = vmatprep.subr.mxu0 0.0
    %619 = vmatpush1.msra.mxu0 0.0
    %620 = vmatprep.subr.mxu0 0.0
    %621 = vmatpush1.msra.mxu0 0.0
    %622 = vmatprep.subr.mxu0 0.0
    %623 = vmatpush1.msra.mxu0 0.0
    %624 = vmatprep.subr.mxu0 0.0
    %625 = vmatpush1.msra.mxu0 0.0
    %626 = vmatprep.subr.mxu0 0.0
    %627 = vmatpush1.msra.mxu0 0.0
    %628 = vmatprep.subr.mxu0 0.0
    %629 = vmatpush1.msra.mxu0 0.0
    %630 = vmatprep.subr.mxu0 0.0
    %631 = vmatpush1.msra.mxu0 0.0
    %632 = vmatprep.subr.mxu0 0.0
    %633 = vmatpush1.msra.mxu0 0.0
    %634 = vmatprep.subr.mxu0 0.0
    %635 = vmatpush1.msra.mxu0 0.0
    %636 = vmatprep.subr.mxu0 0.0
    %637 = vmatpush1.msra.mxu0 0.0
    %638 = vmatprep.subr.mxu0 0.0
    %639 = vmatpush1.msra.mxu0 0.0
    %640 = vmatprep.subr.mxu0 0.0
    %641 = vmatpush1.msra.mxu0 0.0
    %642 = vmatprep.subr.mxu0 0.0
    %643 = vmatpush1.msra.mxu0 0.0
    %644 = vmatprep.mubr.f32.mxu0 0.0
    %645 = vmatmul.mubr.f32.gmra.mrb[0].mxu0 %v578
    %v646 = vpop.f32.mrb[0].mxu0
    %v647 = vadd.f32 0.0, %v646
    %v648 = vpop.f32.mrb[0].mxu0
    %649 = vdwg.mxu0
    %v650 = vld [vmem:[%s8] sm:$0xff]
    %v651 = vld [vmem:[%s8 + $0x8] sm:$0xff]
    %s652 = scalar_lea.vmem %s2, 32
    %v653 = vld [vmem:[%s652] sm:$0xff]
    %v654 = vld [vmem:[%s652 + $0x8] sm:$0xff]
    %v655 = vld [vmem:[%s652 + $0x10] sm:$0xff]
    %v656 = vld [vmem:[%s652 + $0x18] sm:$0xff]
    %s657 = scalar_lea.vmem %s5, 1
    %v658 = vld [vmem:[%s657] sm:$0x1]
    %v660 = vlaneseq
    %v661 = vshrl.u32 %v660, 7
    %v662 = vsub.s32 0, %v661
    %v663 = vrot.slane %v658, %v662
    %665 = vmatprep.subr.mxu0 0.0
    %666 = vmatpush1.msra.mxu0 %v653
    %667 = vmatprep.subr.mxu0 0.0
    %668 = vmatpush1.msra.mxu0 %v654
    %669 = vmatprep.subr.mxu0 0.0
    %670 = vmatpush1.msra.mxu0 %v655
    %671 = vmatprep.subr.mxu0 0.0
    %672 = vmatpush1.msra.mxu0 %v656
    %673 = vmatprep.subr.mxu0 0.0
    %674 = vmatpush1.msra.mxu0 0.0
    %675 = vmatprep.subr.mxu0 0.0
    %676 = vmatpush1.msra.mxu0 0.0
    %677 = vmatprep.subr.mxu0 0.0
    %678 = vmatpush1.msra.mxu0 0.0
    %679 = vmatprep.subr.mxu0 0.0
    %680 = vmatpush1.msra.mxu0 0.0
    %681 = vmatprep.subr.mxu0 0.0
    %682 = vmatpush1.msra.mxu0 0.0
    %683 = vmatprep.subr.mxu0 0.0
    %684 = vmatpush1.msra.mxu0 0.0
    %685 = vmatprep.subr.mxu0 0.0
    %686 = vmatpush1.msra.mxu0 0.0
    %687 = vmatprep.subr.mxu0 0.0
    %688 = vmatpush1.msra.mxu0 0.0
    %689 = vmatprep.subr.mxu0 0.0
    %690 = vmatpush1.msra.mxu0 0.0
    %691 = vmatprep.subr.mxu0 0.0
    %692 = vmatpush1.msra.mxu0 0.0
    %693 = vmatprep.subr.mxu0 0.0
    %694 = vmatpush1.msra.mxu0 0.0
    %695 = vmatprep.subr.mxu0 0.0
    %696 = vmatpush1.msra.mxu0 0.0
    %697 = vmatprep.subr.mxu0 0.0
    %698 = vmatpush1.msra.mxu0 0.0
    %699 = vmatprep.subr.mxu0 0.0
    %700 = vmatpush1.msra.mxu0 0.0
    %701 = vmatprep.subr.mxu0 0.0
    %702 = vmatpush1.msra.mxu0 0.0
    %703 = vmatprep.subr.mxu0 0.0
    %704 = vmatpush1.msra.mxu0 0.0
    %705 = vmatprep.subr.mxu0 0.0
    %706 = vmatpush1.msra.mxu0 0.0
    %707 = vmatprep.subr.mxu0 0.0
    %708 = vmatpush1.msra.mxu0 0.0
    %709 = vmatprep.subr.mxu0 0.0
    %710 = vmatpush1.msra.mxu0 0.0
    %711 = vmatprep.subr.mxu0 0.0
    %712 = vmatpush1.msra.mxu0 0.0
    %713 = vmatprep.subr.mxu0 0.0
    %714 = vmatpush1.msra.mxu0 0.0
    %715 = vmatprep.subr.mxu0 0.0
    %716 = vmatpush1.msra.mxu0 0.0
    %717 = vmatprep.subr.mxu0 0.0
    %718 = vmatpush1.msra.mxu0 0.0
    %719 = vmatprep.subr.mxu0 0.0
    %720 = vmatpush1.msra.mxu0 0.0
    %721 = vmatprep.subr.mxu0 0.0
    %722 = vmatpush1.msra.mxu0 0.0
    %723 = vmatprep.subr.mxu0 0.0
    %724 = vmatpush1.msra.mxu0 0.0
    %725 = vmatprep.subr.mxu0 0.0
    %726 = vmatpush1.msra.mxu0 0.0
    %727 = vmatprep.subr.mxu0 0.0
    %728 = vmatpush1.msra.mxu0 0.0
    %729 = vmatprep.mubr.f32.mxu0 0.0
    %730 = vmatmul.mubr.f32.gmra.mrb[0].mxu0 %v76
    %v731 = vpop.f32.mrb[0].mxu0
    %v732 = vadd.f32 %v663, %v731
    %v733 = vpop.f32.mrb[0].mxu0
    %734 = vmatprep.mubr.f32.mxu0 0.0
    %735 = vmatmul.mubr.f32.gmra.mrb[0].mxu0 %v79
    %v736 = vpop.f32.mrb[0].mxu0
    %v737 = vadd.f32 %v663, %v736
    %v738 = vpop.f32.mrb[0].mxu0
    %739 = vdwg.mxu0
    %s740 = scalar_lea.vmem %s3, 32
    %v741 = vld [vmem:[%s740] sm:$0xff]
    %v742 = vld [vmem:[%s740 + $0x8] sm:$0xff]
    %v743 = vld [vmem:[%s740 + $0x10] sm:$0xff]
    %v744 = vld [vmem:[%s740 + $0x18] sm:$0xff]
    %s745 = scalar_lea.vmem %s6, 1
    %v746 = vld [vmem:[%s745] sm:$0x1]
    %v748 = vlaneseq
    %v749 = vshrl.u32 %v748, 7
    %v750 = vsub.s32 0, %v749
    %v751 = vrot.slane %v746, %v750
    %753 = vmatprep.subr.mxu0 0.0
    %754 = vmatpush1.msra.mxu0 %v741
    %755 = vmatprep.subr.mxu0 0.0
    %756 = vmatpush1.msra.mxu0 %v742
    %757 = vmatprep.subr.mxu0 0.0
    %758 = vmatpush1.msra.mxu0 %v743
    %759 = vmatprep.subr.mxu0 0.0
    %760 = vmatpush1.msra.mxu0 %v744
    %761 = vmatprep.subr.mxu0 0.0
    %762 = vmatpush1.msra.mxu0 0.0
    %763 = vmatprep.subr.mxu0 0.0
    %764 = vmatpush1.msra.mxu0 0.0
    %765 = vmatprep.subr.mxu0 0.0
    %766 = vmatpush1.msra.mxu0 0.0
    %767 = vmatprep.subr.mxu0 0.0
    %768 = vmatpush1.msra.mxu0 0.0
    %769 = vmatprep.subr.mxu0 0.0
    %770 = vmatpush1.msra.mxu0 0.0
    %771 = vmatprep.subr.mxu0 0.0
    %772 = vmatpush1.msra.mxu0 0.0
    %773 = vmatprep.subr.mxu0 0.0
    %774 = vmatpush1.msra.mxu0 0.0
    %775 = vmatprep.subr.mxu0 0.0
    %776 = vmatpush1.msra.mxu0 0.0
    %777 = vmatprep.subr.mxu0 0.0
    %778 = vmatpush1.msra.mxu0 0.0
    %779 = vmatprep.subr.mxu0 0.0
    %780 = vmatpush1.msra.mxu0 0.0
    %781 = vmatprep.subr.mxu0 0.0
    %782 = vmatpush1.msra.mxu0 0.0
    %783 = vmatprep.subr.mxu0 0.0
    %784 = vmatpush1.msra.mxu0 0.0
    %785 = vmatprep.subr.mxu0 0.0
    %786 = vmatpush1.msra.mxu0 0.0
    %787 = vmatprep.subr.mxu0 0.0
    %788 = vmatpush1.msra.mxu0 0.0
    %789 = vmatprep.subr.mxu0 0.0
    %790 = vmatpush1.msra.mxu0 0.0
    %791 = vmatprep.subr.mxu0 0.0
    %792 = vmatpush1.msra.mxu0 0.0
    %793 = vmatprep.subr.mxu0 0.0
    %794 = vmatpush1.msra.mxu0 0.0
    %795 = vmatprep.subr.mxu0 0.0
    %796 = vmatpush1.msra.mxu0 0.0
    %797 = vmatprep.subr.mxu0 0.0
    %798 = vmatpush1.msra.mxu0 0.0
    %799 = vmatprep.subr.mxu0 0.0
    %800 = vmatpush1.msra.mxu0 0.0
    %801 = vmatprep.subr.mxu0 0.0
    %802 = vmatpush1.msra.mxu0 0.0
    %803 = vmatprep.subr.mxu0 0.0
    %804 = vmatpush1.msra.mxu0 0.0
    %805 = vmatprep.subr.mxu0 0.0
    %806 = vmatpush1.msra.mxu0 0.0
    %807 = vmatprep.subr.mxu0 0.0
    %808 = vmatpush1.msra.mxu0 0.0
    %809 = vmatprep.subr.mxu0 0.0
    %810 = vmatpush1.msra.mxu0 0.0
    %811 = vmatprep.subr.mxu0 0.0
    %812 = vmatpush1.msra.mxu0 0.0
    %813 = vmatprep.subr.mxu0 0.0
    %814 = vmatpush1.msra.mxu0 0.0
    %815 = vmatprep.subr.mxu0 0.0
    %816 = vmatpush1.msra.mxu0 0.0
    %817 = vmatprep.mubr.f32.mxu0 0.0
    %818 = vmatmul.mubr.f32.gmra.mrb[0].mxu0 %v76
    %v819 = vpop.f32.mrb[0].mxu0
    %v820 = vadd.f32 %v751, %v819
    %v821 = vpop.f32.mrb[0].mxu0
    %822 = vmatprep.mubr.f32.mxu0 0.0
    %823 = vmatmul.mubr.f32.gmra.mrb[0].mxu0 %v79
    %v824 = vpop.f32.mrb[0].mxu0
    %v825 = vadd.f32 %v751, %v824
    %v826 = vpop.f32.mrb[0].mxu0
    %827 = vdwg.mxu0
    %s828 = scalar_lea.vmem %s4, 32
    %v829 = vld [vmem:[%s828] sm:$0xff]
    %v830 = vld [vmem:[%s828 + $0x8] sm:$0xff]
    %v831 = vld [vmem:[%s828 + $0x10] sm:$0xff]
    %v832 = vld [vmem:[%s828 + $0x18] sm:$0xff]
    %s833 = scalar_lea.vmem %s7, 1
    %v834 = vld [vmem:[%s833] sm:$0x1]
    %v836 = vlaneseq
    %v837 = vshrl.u32 %v836, 7
    %v838 = vsub.s32 0, %v837
    %v839 = vrot.slane %v834, %v838
    %841 = vmatprep.subr.mxu0 0.0
    %842 = vmatpush1.msra.mxu0 %v829
    %843 = vmatprep.subr.mxu0 0.0
    %844 = vmatpush1.msra.mxu0 %v830
    %845 = vmatprep.subr.mxu0 0.0
    %846 = vmatpush1.msra.mxu0 %v831
    %847 = vmatprep.subr.mxu0 0.0
    %848 = vmatpush1.msra.mxu0 %v832
    %849 = vmatprep.subr.mxu0 0.0
    %850 = vmatpush1.msra.mxu0 0.0
    %851 = vmatprep.subr.mxu0 0.0
    %852 = vmatpush1.msra.mxu0 0.0
    %853 = vmatprep.subr.mxu0 0.0
    %854 = vmatpush1.msra.mxu0 0.0
    %855 = vmatprep.subr.mxu0 0.0
    %856 = vmatpush1.msra.mxu0 0.0
    %857 = vmatprep.subr.mxu0 0.0
    %858 = vmatpush1.msra.mxu0 0.0
    %859 = vmatprep.subr.mxu0 0.0
    %860 = vmatpush1.msra.mxu0 0.0
    %861 = vmatprep.subr.mxu0 0.0
    %862 = vmatpush1.msra.mxu0 0.0
    %863 = vmatprep.subr.mxu0 0.0
    %864 = vmatpush1.msra.mxu0 0.0
    %865 = vmatprep.subr.mxu0 0.0
    %866 = vmatpush1.msra.mxu0 0.0
    %867 = vmatprep.subr.mxu0 0.0
    %868 = vmatpush1.msra.mxu0 0.0
    %869 = vmatprep.subr.mxu0 0.0
    %870 = vmatpush1.msra.mxu0 0.0
    %871 = vmatprep.subr.mxu0 0.0
    %872 = vmatpush1.msra.mxu0 0.0
    %873 = vmatprep.subr.mxu0 0.0
    %874 = vmatpush1.msra.mxu0 0.0
    %875 = vmatprep.subr.mxu0 0.0
    %876 = vmatpush1.msra.mxu0 0.0
    %877 = vmatprep.subr.mxu0 0.0
    %878 = vmatpush1.msra.mxu0 0.0
    %879 = vmatprep.subr.mxu0 0.0
    %880 = vmatpush1.msra.mxu0 0.0
    %881 = vmatprep.subr.mxu0 0.0
    %882 = vmatpush1.msra.mxu0 0.0
    %883 = vmatprep.subr.mxu0 0.0
    %884 = vmatpush1.msra.mxu0 0.0
    %885 = vmatprep.subr.mxu0 0.0
    %886 = vmatpush1.msra.mxu0 0.0
    %887 = vmatprep.subr.mxu0 0.0
    %888 = vmatpush1.msra.mxu0 0.0
    %889 = vmatprep.subr.mxu0 0.0
    %890 = vmatpush1.msra.mxu0 0.0
    %891 = vmatprep.subr.mxu0 0.0
    %892 = vmatpush1.msra.mxu0 0.0
    %893 = vmatprep.subr.mxu0 0.0
    %894 = vmatpush1.msra.mxu0 0.0
    %895 = vmatprep.subr.mxu0 0.0
    %896 = vmatpush1.msra.mxu0 0.0
    %897 = vmatprep.subr.mxu0 0.0
    %898 = vmatpush1.msra.mxu0 0.0
    %899 = vmatprep.subr.mxu0 0.0
    %900 = vmatpush1.msra.mxu0 0.0
    %901 = vmatprep.subr.mxu0 0.0
    %902 = vmatpush1.msra.mxu0 0.0
    %903 = vmatprep.subr.mxu0 0.0
    %904 = vmatpush1.msra.mxu0 0.0
    %905 = vmatprep.mubr.f32.mxu0 0.0
    %906 = vmatmul.mubr.f32.gmra.mrb[0].mxu0 %v76
    %v907 = vpop.f32.mrb[0].mxu0
    %v908 = vadd.f32 %v839, %v907
    %v909 = vpop.f32.mrb[0].mxu0
    %910 = vmatprep.mubr.f32.mxu0 0.0
    %911 = vmatmul.mubr.f32.gmra.mrb[0].mxu0 %v79
    %v912 = vpop.f32.mrb[0].mxu0
    %v913 = vadd.f32 %v839, %v912
    %v914 = vpop.f32.mrb[0].mxu0
    %915 = vdwg.mxu0
    %v917 = vsel %vm328, %v732, 0
    %v920 = vsel %vm328, %v820, 0
    %922 = vmatprep.subr.mxu0 0.0
    %923 = vmatpush1.xpose.msra.mxu0 %v920
    %924 = vmatprep.subr.mxu0 0.0
    %925 = vmatpush1.xpose.msra.mxu0 0.0
    %926 = vmatprep.subr.mxu0 0.0
    %927 = vmatpush1.xpose.msra.mxu0 0.0
    %928 = vmatprep.subr.mxu0 0.0
    %929 = vmatpush1.xpose.msra.mxu0 0.0
    %930 = vmatprep.subr.mxu0 0.0
    %931 = vmatpush1.xpose.msra.mxu0 0.0
    %932 = vmatprep.subr.mxu0 0.0
    %933 = vmatpush1.xpose.msra.mxu0 0.0
    %934 = vmatprep.subr.mxu0 0.0
    %935 = vmatpush1.xpose.msra.mxu0 0.0
    %936 = vmatprep.subr.mxu0 0.0
    %937 = vmatpush1.xpose.msra.mxu0 0.0
    %938 = vmatprep.subr.mxu0 0.0
    %939 = vmatpush1.xpose.msra.mxu0 0.0
    %940 = vmatprep.subr.mxu0 0.0
    %941 = vmatpush1.xpose.msra.mxu0 0.0
    %942 = vmatprep.subr.mxu0 0.0
    %943 = vmatpush1.xpose.msra.mxu0 0.0
    %944 = vmatprep.subr.mxu0 0.0
    %945 = vmatpush1.xpose.msra.mxu0 0.0
    %946 = vmatprep.subr.mxu0 0.0
    %947 = vmatpush1.xpose.msra.mxu0 0.0
    %948 = vmatprep.subr.mxu0 0.0
    %949 = vmatpush1.xpose.msra.mxu0 0.0
    %950 = vmatprep.subr.mxu0 0.0
    %951 = vmatpush1.xpose.msra.mxu0 0.0
    %952 = vmatprep.subr.mxu0 0.0
    %953 = vmatpush1.xpose.msra.mxu0 0.0
    %954 = vmatprep.subr.mxu0 0.0
    %955 = vmatpush1.xpose.msra.mxu0 0.0
    %956 = vmatprep.subr.mxu0 0.0
    %957 = vmatpush1.xpose.msra.mxu0 0.0
    %958 = vmatprep.subr.mxu0 0.0
    %959 = vmatpush1.xpose.msra.mxu0 0.0
    %960 = vmatprep.subr.mxu0 0.0
    %961 = vmatpush1.xpose.msra.mxu0 0.0
    %962 = vmatprep.subr.mxu0 0.0
    %963 = vmatpush1.xpose.msra.mxu0 0.0
    %964 = vmatprep.subr.mxu0 0.0
    %965 = vmatpush1.xpose.msra.mxu0 0.0
    %966 = vmatprep.subr.mxu0 0.0
    %967 = vmatpush1.xpose.msra.mxu0 0.0
    %968 = vmatprep.subr.mxu0 0.0
    %969 = vmatpush1.xpose.msra.mxu0 0.0
    %970 = vmatprep.subr.mxu0 0.0
    %971 = vmatpush1.xpose.msra.mxu0 0.0
    %972 = vmatprep.subr.mxu0 0.0
    %973 = vmatpush1.xpose.msra.mxu0 0.0
    %974 = vmatprep.subr.mxu0 0.0
    %975 = vmatpush1.xpose.msra.mxu0 0.0
    %976 = vmatprep.subr.mxu0 0.0
    %977 = vmatpush1.xpose.msra.mxu0 0.0
    %978 = vmatprep.subr.mxu0 0.0
    %979 = vmatpush1.xpose.msra.mxu0 0.0
    %980 = vmatprep.subr.mxu0 0.0
    %981 = vmatpush1.xpose.msra.mxu0 0.0
    %982 = vmatprep.subr.mxu0 0.0
    %983 = vmatpush1.xpose.msra.mxu0 0.0
    %984 = vmatprep.subr.mxu0 0.0
    %985 = vmatpush1.xpose.msra.mxu0 0.0
    %986 = vmatprep.mubr.f32.mxu0 0.0
    %987 = vmatmul.mubr.f32.gmra.mrb[0].mxu0 %v917
    %v988 = vpop.f32.mrb[0].mxu0
    %v989 = vadd.f32 %v62, %v988
    %v990 = vpop.f32.mrb[0].mxu0
    %991 = vdwg.mxu0
    %v993 = vsel %vm328, %v737, 0
    %v996 = vsel %vm328, %v825, 0
    %998 = vmatprep.subr.mxu0 0.0
    %999 = vmatpush1.xpose.msra.mxu0 %v996
    %1000 = vmatprep.subr.mxu0 0.0
    %1001 = vmatpush1.xpose.msra.mxu0 0.0
    %1002 = vmatprep.subr.mxu0 0.0
    %1003 = vmatpush1.xpose.msra.mxu0 0.0
    %1004 = vmatprep.subr.mxu0 0.0
    %1005 = vmatpush1.xpose.msra.mxu0 0.0
    %1006 = vmatprep.subr.mxu0 0.0
    %1007 = vmatpush1.xpose.msra.mxu0 0.0
    %1008 = vmatprep.subr.mxu0 0.0
    %1009 = vmatpush1.xpose.msra.mxu0 0.0
    %1010 = vmatprep.subr.mxu0 0.0
    %1011 = vmatpush1.xpose.msra.mxu0 0.0
    %1012 = vmatprep.subr.mxu0 0.0
    %1013 = vmatpush1.xpose.msra.mxu0 0.0
    %1014 = vmatprep.subr.mxu0 0.0
    %1015 = vmatpush1.xpose.msra.mxu0 0.0
    %1016 = vmatprep.subr.mxu0 0.0
    %1017 = vmatpush1.xpose.msra.mxu0 0.0
    %1018 = vmatprep.subr.mxu0 0.0
    %1019 = vmatpush1.xpose.msra.mxu0 0.0
    %1020 = vmatprep.subr.mxu0 0.0
    %1021 = vmatpush1.xpose.msra.mxu0 0.0
    %1022 = vmatprep.subr.mxu0 0.0
    %1023 = vmatpush1.xpose.msra.mxu0 0.0
    %1024 = vmatprep.subr.mxu0 0.0
    %1025 = vmatpush1.xpose.msra.mxu0 0.0
    %1026 = vmatprep.subr.mxu0 0.0
    %1027 = vmatpush1.xpose.msra.mxu0 0.0
    %1028 = vmatprep.subr.mxu0 0.0
    %1029 = vmatpush1.xpose.msra.mxu0 0.0
    %1030 = vmatprep.subr.mxu0 0.0
    %1031 = vmatpush1.xpose.msra.mxu0 0.0
    %1032 = vmatprep.subr.mxu0 0.0
    %1033 = vmatpush1.xpose.msra.mxu0 0.0
    %1034 = vmatprep.subr.mxu0 0.0
    %1035 = vmatpush1.xpose.msra.mxu0 0.0
    %1036 = vmatprep.subr.mxu0 0.0
    %1037 = vmatpush1.xpose.msra.mxu0 0.0
    %1038 = vmatprep.subr.mxu0 0.0
    %1039 = vmatpush1.xpose.msra.mxu0 0.0
    %1040 = vmatprep.subr.mxu0 0.0
    %1041 = vmatpush1.xpose.msra.mxu0 0.0
    %1042 = vmatprep.subr.mxu0 0.0
    %1043 = vmatpush1.xpose.msra.mxu0 0.0
    %1044 = vmatprep.subr.mxu0 0.0
    %1045 = vmatpush1.xpose.msra.mxu0 0.0
    %1046 = vmatprep.subr.mxu0 0.0
    %1047 = vmatpush1.xpose.msra.mxu0 0.0
    %1048 = vmatprep.subr.mxu0 0.0
    %1049 = vmatpush1.xpose.msra.mxu0 0.0
    %1050 = vmatprep.subr.mxu0 0.0
    %1051 = vmatpush1.xpose.msra.mxu0 0.0
    %1052 = vmatprep.subr.mxu0 0.0
    %1053 = vmatpush1.xpose.msra.mxu0 0.0
    %1054 = vmatprep.subr.mxu0 0.0
    %1055 = vmatpush1.xpose.msra.mxu0 0.0
    %1056 = vmatprep.subr.mxu0 0.0
    %1057 = vmatpush1.xpose.msra.mxu0 0.0
    %1058 = vmatprep.subr.mxu0 0.0
    %1059 = vmatpush1.xpose.msra.mxu0 0.0
    %1060 = vmatprep.subr.mxu0 0.0
    %1061 = vmatpush1.xpose.msra.mxu0 0.0
    %1062 = vmatprep.mubr.f32.mxu0 0.0
    %1063 = vmatmul.mubr.f32.gmra.mrb[0].mxu0 %v993
    %v1064 = vpop.f32.mrb[0].mxu0
    %v1065 = vadd.f32 %v62, %v1064
    %v1066 = vpop.f32.mrb[0].mxu0
    %1067 = vdwg.mxu0
    %v1068 = vsel %vm481, %v989, -inf
    %1069 = vmax.xlane.f32.xlu0 %v1068
    %v1070 = vpop.xlane.xlu0 %1069
    %v1071 = vsel %vm481, %v1065, -inf
    %1072 = vmax.xlane.f32.xlu0 %v1071
    %v1073 = vpop.xlane.xlu0 %1072
    %v1074 = vsub.f32 %v989, %v1070
    %v1075 = vsub.f32 %v1065, %v1073
    %v1076 = vmul.f32 %v1074, 1.442695
    %v1077 = vpow.pop %v1076
    %v1078 = vmul.f32 %v1075, 1.442695
    %v1079 = vpow.pop %v1078
    %v1080 = vsel %vm481, %v1077, 0.0
    %1081 = vadd.xlane.f32.xlu0 %v1080
    %v1082 = vpop.xlane.xlu0 %1081
    %v1083 = vsel %vm481, %v1079, 0.0
    %1084 = vadd.xlane.f32.xlu0 %v1083
    %v1085 = vpop.xlane.xlu0 %1084
    %v1086 = vrcp.pop %v1082
    %v1087 = vrcp.pop %v1085
    %v1088 = vmul.f32 %v1077, %v1086
    %v1089 = vmul.f32 %v1079, %v1087
    %v1091 = vsel %vm481, %v1088, 0
    %1093 = vmatprep.subr.mxu0 0.0
    %1094 = vmatpush1.msra.mxu0 %v908
    %1095 = vmatprep.subr.mxu0 0.0
    %1096 = vmatpush1.msra.mxu0 0.0
    %1097 = vmatprep.subr.mxu0 0.0
    %1098 = vmatpush1.msra.mxu0 0.0
    %1099 = vmatprep.subr.mxu0 0.0
    %1100 = vmatpush1.msra.mxu0 0.0
    %1101 = vmatprep.subr.mxu0 0.0
    %1102 = vmatpush1.msra.mxu0 0.0
    %1103 = vmatprep.subr.mxu0 0.0
    %1104 = vmatpush1.msra.mxu0 0.0
    %1105 = vmatprep.subr.mxu0 0.0
    %1106 = vmatpush1.msra.mxu0 0.0
    %1107 = vmatprep.subr.mxu0 0.0
    %1108 = vmatpush1.msra.mxu0 0.0
    %1109 = vmatprep.subr.mxu0 0.0
    %1110 = vmatpush1.msra.mxu0 0.0
    %1111 = vmatprep.subr.mxu0 0.0
    %1112 = vmatpush1.msra.mxu0 0.0
    %1113 = vmatprep.subr.mxu0 0.0
    %1114 = vmatpush1.msra.mxu0 0.0
    %1115 = vmatprep.subr.mxu0 0.0
    %1116 = vmatpush1.msra.mxu0 0.0
    %1117 = vmatprep.subr.mxu0 0.0
    %1118 = vmatpush1.msra.mxu0 0.0
    %1119 = vmatprep.subr.mxu0 0.0
    %1120 = vmatpush1.msra.mxu0 0.0
    %1121 = vmatprep.subr.mxu0 0.0
    %1122 = vmatpush1.msra.mxu0 0.0
    %1123 = vmatprep.subr.mxu0 0.0
    %1124 = vmatpush1.msra.mxu0 0.0
    %1125 = vmatprep.subr.mxu0 0.0
    %1126 = vmatpush1.msra.mxu0 0.0
    %1127 = vmatprep.subr.mxu0 0.0
    %1128 = vmatpush1.msra.mxu0 0.0
    %1129 = vmatprep.subr.mxu0 0.0
    %1130 = vmatpush1.msra.mxu0 0.0
    %1131 = vmatprep.subr.mxu0 0.0
    %1132 = vmatpush1.msra.mxu0 0.0
    %1133 = vmatprep.subr.mxu0 0.0
    %1134 = vmatpush1.msra.mxu0 0.0
    %1135 = vmatprep.subr.mxu0 0.0
    %1136 = vmatpush1.msra.mxu0 0.0
    %1137 = vmatprep.subr.mxu0 0.0
    %1138 = vmatpush1.msra.mxu0 0.0
    %1139 = vmatprep.subr.mxu0 0.0
    %1140 = vmatpush1.msra.mxu0 0.0
    %1141 = vmatprep.subr.mxu0 0.0
    %1142 = vmatpush1.msra.mxu0 0.0
    %1143 = vmatprep.subr.mxu0 0.0
    %1144 = vmatpush1.msra.mxu0 0.0
    %1145 = vmatprep.subr.mxu0 0.0
    %1146 = vmatpush1.msra.mxu0 0.0
    %1147 = vmatprep.subr.mxu0 0.0
    %1148 = vmatpush1.msra.mxu0 0.0
    %1149 = vmatprep.subr.mxu0 0.0
    %1150 = vmatpush1.msra.mxu0 0.0
    %1151 = vmatprep.subr.mxu0 0.0
    %1152 = vmatpush1.msra.mxu0 0.0
    %1153 = vmatprep.subr.mxu0 0.0
    %1154 = vmatpush1.msra.mxu0 0.0
    %1155 = vmatprep.subr.mxu0 0.0
    %1156 = vmatpush1.msra.mxu0 0.0
    %1157 = vmatprep.mubr.f32.mxu0 0.0
    %1158 = vmatmul.mubr.f32.gmra.mrb[0].mxu0 %v1091
    %v1159 = vpop.f32.mrb[0].mxu0
    %v1160 = vadd.f32 0.0, %v1159
    %v1161 = vpop.f32.mrb[0].mxu0
    %1162 = vdwg.mxu0
    %v1164 = vsel %vm481, %v1089, 0
    %1166 = vmatprep.subr.mxu0 0.0
    %1167 = vmatpush1.msra.mxu0 %v913
    %1168 = vmatprep.subr.mxu0 0.0
    %1169 = vmatpush1.msra.mxu0 0.0
    %1170 = vmatprep.subr.mxu0 0.0
    %1171 = vmatpush1.msra.mxu0 0.0
    %1172 = vmatprep.subr.mxu0 0.0
    %1173 = vmatpush1.msra.mxu0 0.0
    %1174 = vmatprep.subr.mxu0 0.0
    %1175 = vmatpush1.msra.mxu0 0.0
    %1176 = vmatprep.subr.mxu0 0.0
    %1177 = vmatpush1.msra.mxu0 0.0
    %1178 = vmatprep.subr.mxu0 0.0
    %1179 = vmatpush1.msra.mxu0 0.0
    %1180 = vmatprep.subr.mxu0 0.0
    %1181 = vmatpush1.msra.mxu0 0.0
    %1182 = vmatprep.subr.mxu0 0.0
    %1183 = vmatpush1.msra.mxu0 0.0
    %1184 = vmatprep.subr.mxu0 0.0
    %1185 = vmatpush1.msra.mxu0 0.0
    %1186 = vmatprep.subr.mxu0 0.0
    %1187 = vmatpush1.msra.mxu0 0.0
    %1188 = vmatprep.subr.mxu0 0.0
    %1189 = vmatpush1.msra.mxu0 0.0
    %1190 = vmatprep.subr.mxu0 0.0
    %1191 = vmatpush1.msra.mxu0 0.0
    %1192 = vmatprep.subr.mxu0 0.0
    %1193 = vmatpush1.msra.mxu0 0.0
    %1194 = vmatprep.subr.mxu0 0.0
    %1195 = vmatpush1.msra.mxu0 0.0
    %1196 = vmatprep.subr.mxu0 0.0
    %1197 = vmatpush1.msra.mxu0 0.0
    %1198 = vmatprep.subr.mxu0 0.0
    %1199 = vmatpush1.msra.mxu0 0.0
    %1200 = vmatprep.subr.mxu0 0.0
    %1201 = vmatpush1.msra.mxu0 0.0
    %1202 = vmatprep.subr.mxu0 0.0
    %1203 = vmatpush1.msra.mxu0 0.0
    %1204 = vmatprep.subr.mxu0 0.0
    %1205 = vmatpush1.msra.mxu0 0.0
    %1206 = vmatprep.subr.mxu0 0.0
    %1207 = vmatpush1.msra.mxu0 0.0
    %1208 = vmatprep.subr.mxu0 0.0
    %1209 = vmatpush1.msra.mxu0 0.0
    %1210 = vmatprep.subr.mxu0 0.0
    %1211 = vmatpush1.msra.mxu0 0.0
    %1212 = vmatprep.subr.mxu0 0.0
    %1213 = vmatpush1.msra.mxu0 0.0
    %1214 = vmatprep.subr.mxu0 0.0
    %1215 = vmatpush1.msra.mxu0 0.0
    %1216 = vmatprep.subr.mxu0 0.0
    %1217 = vmatpush1.msra.mxu0 0.0
    %1218 = vmatprep.subr.mxu0 0.0
    %1219 = vmatpush1.msra.mxu0 0.0
    %1220 = vmatprep.subr.mxu0 0.0
    %1221 = vmatpush1.msra.mxu0 0.0
    %1222 = vmatprep.subr.mxu0 0.0
    %1223 = vmatpush1.msra.mxu0 0.0
    %1224 = vmatprep.subr.mxu0 0.0
    %1225 = vmatpush1.msra.mxu0 0.0
    %1226 = vmatprep.subr.mxu0 0.0
    %1227 = vmatpush1.msra.mxu0 0.0
    %1228 = vmatprep.subr.mxu0 0.0
    %1229 = vmatpush1.msra.mxu0 0.0
    %1230 = vmatprep.mubr.f32.mxu0 0.0
    %1231 = vmatmul.mubr.f32.gmra.mrb[0].mxu0 %v1164
    %v1232 = vpop.f32.mrb[0].mxu0
    %v1233 = vadd.f32 0.0, %v1232
    %v1234 = vpop.f32.mrb[0].mxu0
    %1235 = vdwg.mxu0
    %s1236 = scalar_lea.vmem %s8, 16
    %v1237 = vld [vmem:[%s1236] sm:$0xff]
    %v1238 = vld [vmem:[%s1236 + $0x8] sm:$0xff]
    %v1240 = vsel %vm328, %v1160, 0
    %v1243 = vsel %vm328, %v1233, 0
    %1245 = vmatprep.subr.mxu0 0.0
    %1246 = vmatpush1.msra.mxu0 %v1237
    %1247 = vmatprep.subr.mxu0 0.0
    %1248 = vmatpush1.msra.mxu0 %v1238
    %1249 = vmatprep.subr.mxu0 0.0
    %1250 = vmatpush1.msra.mxu0 0.0
    %1251 = vmatprep.subr.mxu0 0.0
    %1252 = vmatpush1.msra.mxu0 0.0
    %1253 = vmatprep.subr.mxu0 0.0
    %1254 = vmatpush1.msra.mxu0 0.0
    %1255 = vmatprep.subr.mxu0 0.0
    %1256 = vmatpush1.msra.mxu0 0.0
    %1257 = vmatprep.subr.mxu0 0.0
    %1258 = vmatpush1.msra.mxu0 0.0
    %1259 = vmatprep.subr.mxu0 0.0
    %1260 = vmatpush1.msra.mxu0 0.0
    %1261 = vmatprep.subr.mxu0 0.0
    %1262 = vmatpush1.msra.mxu0 0.0
    %1263 = vmatprep.subr.mxu0 0.0
    %1264 = vmatpush1.msra.mxu0 0.0
    %1265 = vmatprep.subr.mxu0 0.0
    %1266 = vmatpush1.msra.mxu0 0.0
    %1267 = vmatprep.subr.mxu0 0.0
    %1268 = vmatpush1.msra.mxu0 0.0
    %1269 = vmatprep.subr.mxu0 0.0
    %1270 = vmatpush1.msra.mxu0 0.0
    %1271 = vmatprep.subr.mxu0 0.0
    %1272 = vmatpush1.msra.mxu0 0.0
    %1273 = vmatprep.subr.mxu0 0.0
    %1274 = vmatpush1.msra.mxu0 0.0
    %1275 = vmatprep.subr.mxu0 0.0
    %1276 = vmatpush1.msra.mxu0 0.0
    %1277 = vmatprep.subr.mxu0 0.0
    %1278 = vmatpush1.msra.mxu0 0.0
    %1279 = vmatprep.subr.mxu0 0.0
    %1280 = vmatpush1.msra.mxu0 0.0
    %1281 = vmatprep.subr.mxu0 0.0
    %1282 = vmatpush1.msra.mxu0 0.0
    %1283 = vmatprep.subr.mxu0 0.0
    %1284 = vmatpush1.msra.mxu0 0.0
    %1285 = vmatprep.subr.mxu0 0.0
    %1286 = vmatpush1.msra.mxu0 0.0
    %1287 = vmatprep.subr.mxu0 0.0
    %1288 = vmatpush1.msra.mxu0 0.0
    %1289 = vmatprep.subr.mxu0 0.0
    %1290 = vmatpush1.msra.mxu0 0.0
    %1291 = vmatprep.subr.mxu0 0.0
    %1292 = vmatpush1.msra.mxu0 0.0
    %1293 = vmatprep.subr.mxu0 0.0
    %1294 = vmatpush1.msra.mxu0 0.0
    %1295 = vmatprep.subr.mxu0 0.0
    %1296 = vmatpush1.msra.mxu0 0.0
    %1297 = vmatprep.subr.mxu0 0.0
    %1298 = vmatpush1.msra.mxu0 0.0
    %1299 = vmatprep.subr.mxu0 0.0
    %1300 = vmatpush1.msra.mxu0 0.0
    %1301 = vmatprep.subr.mxu0 0.0
    %1302 = vmatpush1.msra.mxu0 0.0
    %1303 = vmatprep.subr.mxu0 0.0
    %1304 = vmatpush1.msra.mxu0 0.0
    %1305 = vmatprep.subr.mxu0 0.0
    %1306 = vmatpush1.msra.mxu0 0.0
    %1307 = vmatprep.subr.mxu0 0.0
    %1308 = vmatpush1.msra.mxu0 0.0
    %1309 = vmatprep.mubr.f32.mxu0 0.0
    %1310 = vmatmul.mubr.f32.gmra.mrb[0].mxu0 %v1240
    %v1311 = vpop.f32.mrb[0].mxu0
    %v1312 = vadd.f32 0.0, %v1311
    %v1313 = vpop.f32.mrb[0].mxu0
    %1314 = vmatprep.mubr.f32.mxu0 0.0
    %1315 = vmatmul.mubr.f32.gmra.mrb[0].mxu0 %v1243
    %v1316 = vpop.f32.mrb[0].mxu0
    %v1317 = vadd.f32 0.0, %v1316
    %v1318 = vpop.f32.mrb[0].mxu0
    %1319 = vdwg.mxu0
    %v1321 = vsel %vm328, %v574, 0
    %v1324 = vsel %vm328, %v647, 0
    %1326 = vmatprep.subr.mxu0 0.0
    %1327 = vmatpush1.msra.mxu0 %v650
    %1328 = vmatprep.subr.mxu0 0.0
    %1329 = vmatpush1.msra.mxu0 %v651
    %1330 = vmatprep.subr.mxu0 0.0
    %1331 = vmatpush1.msra.mxu0 0.0
    %1332 = vmatprep.subr.mxu0 0.0
    %1333 = vmatpush1.msra.mxu0 0.0
    %1334 = vmatprep.subr.mxu0 0.0
    %1335 = vmatpush1.msra.mxu0 0.0
    %1336 = vmatprep.subr.mxu0 0.0
    %1337 = vmatpush1.msra.mxu0 0.0
    %1338 = vmatprep.subr.mxu0 0.0
    %1339 = vmatpush1.msra.mxu0 0.0
    %1340 = vmatprep.subr.mxu0 0.0
    %1341 = vmatpush1.msra.mxu0 0.0
    %1342 = vmatprep.subr.mxu0 0.0
    %1343 = vmatpush1.msra.mxu0 0.0
    %1344 = vmatprep.subr.mxu0 0.0
    %1345 = vmatpush1.msra.mxu0 0.0
    %1346 = vmatprep.subr.mxu0 0.0
    %1347 = vmatpush1.msra.mxu0 0.0
    %1348 = vmatprep.subr.mxu0 0.0
    %1349 = vmatpush1.msra.mxu0 0.0
    %1350 = vmatprep.subr.mxu0 0.0
    %1351 = vmatpush1.msra.mxu0 0.0
    %1352 = vmatprep.subr.mxu0 0.0
    %1353 = vmatpush1.msra.mxu0 0.0
    %1354 = vmatprep.subr.mxu0 0.0
    %1355 = vmatpush1.msra.mxu0 0.0
    %1356 = vmatprep.subr.mxu0 0.0
    %1357 = vmatpush1.msra.mxu0 0.0
    %1358 = vmatprep.subr.mxu0 0.0
    %1359 = vmatpush1.msra.mxu0 0.0
    %1360 = vmatprep.subr.mxu0 0.0
    %1361 = vmatpush1.msra.mxu0 0.0
    %1362 = vmatprep.subr.mxu0 0.0
    %1363 = vmatpush1.msra.mxu0 0.0
    %1364 = vmatprep.subr.mxu0 0.0
    %1365 = vmatpush1.msra.mxu0 0.0
    %1366 = vmatprep.subr.mxu0 0.0
    %1367 = vmatpush1.msra.mxu0 0.0
    %1368 = vmatprep.subr.mxu0 0.0
    %1369 = vmatpush1.msra.mxu0 0.0
    %1370 = vmatprep.subr.mxu0 0.0
    %1371 = vmatpush1.msra.mxu0 0.0
    %1372 = vmatprep.subr.mxu0 0.0
    %1373 = vmatpush1.msra.mxu0 0.0
    %1374 = vmatprep.subr.mxu0 0.0
    %1375 = vmatpush1.msra.mxu0 0.0
    %1376 = vmatprep.subr.mxu0 0.0
    %1377 = vmatpush1.msra.mxu0 0.0
    %1378 = vmatprep.subr.mxu0 0.0
    %1379 = vmatpush1.msra.mxu0 0.0
    %1380 = vmatprep.subr.mxu0 0.0
    %1381 = vmatpush1.msra.mxu0 0.0
    %1382 = vmatprep.subr.mxu0 0.0
    %1383 = vmatpush1.msra.mxu0 0.0
    %1384 = vmatprep.subr.mxu0 0.0
    %1385 = vmatpush1.msra.mxu0 0.0
    %1386 = vmatprep.subr.mxu0 0.0
    %1387 = vmatpush1.msra.mxu0 0.0
    %1388 = vmatprep.subr.mxu0 0.0
    %1389 = vmatpush1.msra.mxu0 0.0
    %1390 = vmatprep.mubr.f32.mxu0 0.0
    %1391 = vmatmul.mubr.f32.gmra.mrb[0].mxu0 %v1321
    %v1392 = vpop.f32.mrb[0].mxu0
    %v1393 = vadd.f32 %v1312, %v1392
    %v1394 = vpop.f32.mrb[0].mxu0
    %1395 = vmatprep.mubr.f32.mxu0 0.0
    %1396 = vmatmul.mubr.f32.gmra.mrb[0].mxu0 %v1324
    %v1397 = vpop.f32.mrb[0].mxu0
    %v1398 = vadd.f32 %v1317, %v1397
    %v1399 = vpop.f32.mrb[0].mxu0
    %1400 = vdwg.mxu0
    %v1401 = vld [vmem:[%s9] sm:$0x1]
    %v1403 = vlaneseq
    %v1404 = vshrl.u32 %v1403, 7
    %v1405 = vsub.s32 0, %v1404
    %v1406 = vrot.slane %v1401, %v1405
    %v1408 = vadd.f32 %v1393, %v1406
    %v1409 = vadd.f32 %v1398, %v1406
    %v1410 = vadd.f32 %v60, %v1408
    %v1411 = vadd.f32 %v61, %v1409
    %v1412 = vld [vmem:[%s10] sm:$0x1]
    %v1413 = vld [vmem:[%s11] sm:$0x1]
    %v1414 = vsel %vm74, %v1410, 0.0
    %1415 = vadd.xlane.f32.xlu0 %v1414
    %v1416 = vpop.xlane.xlu0 %1415
    %v1417 = vsel %vm74, %v1411, 0.0
    %1418 = vadd.xlane.f32.xlu0 %v1417
    %v1419 = vpop.xlane.xlu0 %1418
    %v1420 = vrcp.pop 32.0
    %v1421 = vmul.f32 %v1416, %v1420
    %v1422 = vmul.f32 %v1419, %v1420
    %v1423 = vsub.f32 %v1410, %v1421
    %v1424 = vsub.f32 %v1411, %v1422
    %v1425 = vmul.f32 %v1423, %v1423
    %v1426 = vmul.f32 %v1424, %v1424
    %v1427 = vsel %vm74, %v1425, 0.0
    %1428 = vadd.xlane.f32.xlu0 %v1427
    %v1429 = vpop.xlane.xlu0 %1428
    %v1430 = vsel %vm74, %v1426, 0.0
    %1431 = vadd.xlane.f32.xlu0 %v1430
    %v1432 = vpop.xlane.xlu0 %1431
    %v1433 = vmul.f32 %v1429, %v1420
    %v1434 = vmul.f32 %v1432, %v1420
    %v1435 = vadd.f32 %v1433, 1e-06
    %v1436 = vadd.f32 %v1434, 1e-06
    %v1437 = vrsqrt.pop %v1435
    %v1438 = vrsqrt.pop %v1436
    %v1439 = vmul.f32 %v1423, %v1437
    %v1440 = vmul.f32 %v1424, %v1438
    %v1442 = vlaneseq
    %v1443 = vshrl.u32 %v1442, 7
    %v1444 = vsub.s32 0, %v1443
    %v1445 = vrot.slane %v1412, %v1444
    %v1447 = vmul.f32 %v1439, %v1445
    %v1448 = vmul.f32 %v1440, %v1445
    %v1450 = vlaneseq
    %v1451 = vshrl.u32 %v1450, 7
    %v1452 = vsub.s32 0, %v1451
    %v1453 = vrot.slane %v1413, %v1452
    %v1455 = vadd.f32 %v1447, %v1453
    %v1456 = vadd.f32 %v1448, %v1453
    %v1457 = vld [vmem:[%s12] sm:$0xff]
    %v1458 = vld [vmem:[%s12 + $0x8] sm:$0xff]
    %v1459 = vld [vmem:[%s12 + $0x10] sm:$0xff]
    %v1460 = vld [vmem:[%s12 + $0x18] sm:$0xff]
    %v1461 = vld [vmem:[%s12 + $0x20] sm:$0xff]
    %v1462 = vld [vmem:[%s12 + $0x28] sm:$0xff]
    %v1463 = vld [vmem:[%s12 + $0x30] sm:$0xff]
    %v1464 = vld [vmem:[%s12 + $0x38] sm:$0xff]
    %v1465 = vld [vmem:[%s13] sm:$0x3]
    %v1467 = vlaneseq
    %v1468 = vshrl.u32 %v1467, 7
    %v1469 = vsub.s32 0, %v1468
    %v1470 = vrot.slane %v1465, %v1469
    %v1471 = vlaneseq
    %v1472 = vshrl.u32 %v1471, 7
    %v1473 = vsub.s32 1, %v1472
    %v1474 = vrot.slane %v1465, %v1473
    %v1478 = vsel %vm74, %v1455, 0
    %v1481 = vsel %vm74, %v1456, 0
    %1483 = vmatprep.subr.mxu0 %v1458
    %1484 = vmatpush1.msra.mxu0 %v1457
    %1485 = vmatprep.subr.mxu0 %v1460
    %1486 = vmatpush1.msra.mxu0 %v1459
    %1487 = vmatprep.subr.mxu0 %v1462
    %1488 = vmatpush1.msra.mxu0 %v1461
    %1489 = vmatprep.subr.mxu0 %v1464
    %1490 = vmatpush1.msra.mxu0 %v1463
    %1491 = vmatprep.subr.mxu0 0.0
    %1492 = vmatpush1.msra.mxu0 0.0
    %1493 = vmatprep.subr.mxu0 0.0
    %1494 = vmatpush1.msra.mxu0 0.0
    %1495 = vmatprep.subr.mxu0 0.0
    %1496 = vmatpush1.msra.mxu0 0.0
    %1497 = vmatprep.subr.mxu0 0.0
    %1498 = vmatpush1.msra.mxu0 0.0
    %1499 = vmatprep.subr.mxu0 0.0
    %1500 = vmatpush1.msra.mxu0 0.0
    %1501 = vmatprep.subr.mxu0 0.0
    %1502 = vmatpush1.msra.mxu0 0.0
    %1503 = vmatprep.subr.mxu0 0.0
    %1504 = vmatpush1.msra.mxu0 0.0
    %1505 = vmatprep.subr.mxu0 0.0
    %1506 = vmatpush1.msra.mxu0 0.0
    %1507 = vmatprep.subr.mxu0 0.0
    %1508 = vmatpush1.msra.mxu0 0.0
    %1509 = vmatprep.subr.mxu0 0.0
    %1510 = vmatpush1.msra.mxu0 0.0
    %1511 = vmatprep.subr.mxu0 0.0
    %1512 = vmatpush1.msra.mxu0 0.0
    %1513 = vmatprep.subr.mxu0 0.0
    %1514 = vmatpush1.msra.mxu0 0.0
    %1515 = vmatprep.subr.mxu0 0.0
    %1516 = vmatpush1.msra.mxu0 0.0
    %1517 = vmatprep.subr.mxu0 0.0
    %1518 = vmatpush1.msra.mxu0 0.0
    %1519 = vmatprep.subr.mxu0 0.0
    %1520 = vmatpush1.msra.mxu0 0.0
    %1521 = vmatprep.subr.mxu0 0.0
    %1522 = vmatpush1.msra.mxu0 0.0
    %1523 = vmatprep.subr.mxu0 0.0
    %1524 = vmatpush1.msra.mxu0 0.0
    %1525 = vmatprep.subr.mxu0 0.0
    %1526 = vmatpush1.msra.mxu0 0.0
    %1527 = vmatprep.subr.mxu0 0.0
    %1528 = vmatpush1.msra.mxu0 0.0
    %1529 = vmatprep.subr.mxu0 0.0
    %1530 = vmatpush1.msra.mxu0 0.0
    %1531 = vmatprep.subr.mxu0 0.0
    %1532 = vmatpush1.msra.mxu0 0.0
    %1533 = vmatprep.subr.mxu0 0.0
    %1534 = vmatpush1.msra.mxu0 0.0
    %1535 = vmatprep.subr.mxu0 0.0
    %1536 = vmatpush1.msra.mxu0 0.0
    %1537 = vmatprep.subr.mxu0 0.0
    %1538 = vmatpush1.msra.mxu0 0.0
    %1539 = vmatprep.subr.mxu0 0.0
    %1540 = vmatpush1.msra.mxu0 0.0
    %1541 = vmatprep.subr.mxu0 0.0
    %1542 = vmatpush1.msra.mxu0 0.0
    %1543 = vmatprep.subr.mxu0 0.0
    %1544 = vmatpush1.msra.mxu0 0.0
    %1545 = vmatprep.subr.mxu0 0.0
    %1546 = vmatpush1.msra.mxu0 0.0
    %1547 = vmatprep.mubr.f32.mxu0 0.0
    %1548 = vmatmul.mubr.f32.gmra.mrb[0].mxu0 %v1478
    %v1549 = vpop.f32.mrb[0].mxu0
    %v1550 = vadd.f32 %v1470, %v1549
    %v1551 = vpop.f32.mrb[0].mxu0
    %v1552 = vadd.f32 %v1474, %v1551
    %1553 = vmatprep.mubr.f32.mxu0 0.0
    %1554 = vmatmul.mubr.f32.gmra.mrb[0].mxu0 %v1481
    %v1555 = vpop.f32.mrb[0].mxu0
    %v1556 = vadd.f32 %v1470, %v1555
    %v1557 = vpop.f32.mrb[0].mxu0
    %v1558 = vadd.f32 %v1474, %v1557
    %1559 = vdwg.mxu0
    %v1560 = vmax.f32 %v1550, 0.0
    %v1561 = vmax.f32 %v1552, 0.0
    %v1562 = vmax.f32 %v1556, 0.0
    %v1563 = vmax.f32 %v1558, 0.0
    %v1564 = vld [vmem:[%s14] sm:$0xff]
    %v1565 = vld [vmem:[%s14 + $0x8] sm:$0xff]
    %v1566 = vld [vmem:[%s14 + $0x10] sm:$0xff]
    %v1567 = vld [vmem:[%s14 + $0x18] sm:$0xff]
    %v1568 = vld [vmem:[%s14 + $0x20] sm:$0xff]
    %v1569 = vld [vmem:[%s14 + $0x28] sm:$0xff]
    %v1570 = vld [vmem:[%s14 + $0x30] sm:$0xff]
    %v1571 = vld [vmem:[%s14 + $0x38] sm:$0xff]
    %v1572 = vld [vmem:[%s14 + $0x40] sm:$0xff]
    %v1573 = vld [vmem:[%s14 + $0x48] sm:$0xff]
    %v1574 = vld [vmem:[%s14 + $0x50] sm:$0xff]
    %v1575 = vld [vmem:[%s14 + $0x58] sm:$0xff]
    %v1576 = vld [vmem:[%s14 + $0x60] sm:$0xff]
    %v1577 = vld [vmem:[%s14 + $0x68] sm:$0xff]
    %v1578 = vld [vmem:[%s14 + $0x70] sm:$0xff]
    %v1579 = vld [vmem:[%s14 + $0x78] sm:$0xff]
    %v1580 = vld [vmem:[%s14 + $0x80] sm:$0xff]
    %v1581 = vld [vmem:[%s14 + $0x88] sm:$0xff]
    %v1582 = vld [vmem:[%s14 + $0x90] sm:$0xff]
    %v1583 = vld [vmem:[%s14 + $0x98] sm:$0xff]
    %v1584 = vld [vmem:[%s14 + $0xa0] sm:$0xff]
    %v1585 = vld [vmem:[%s14 + $0xa8] sm:$0xff]
    %v1586 = vld [vmem:[%s14 + $0xb0] sm:$0xff]
    %v1587 = vld [vmem:[%s14 + $0xb8] sm:$0xff]
    %v1588 = vld [vmem:[%s14 + $0xc0] sm:$0xff]
    %v1589 = vld [vmem:[%s14 + $0xc8] sm:$0xff]
    %v1590 = vld [vmem:[%s14 + $0xd0] sm:$0xff]
    %v1591 = vld [vmem:[%s14 + $0xd8] sm:$0xff]
    %v1592 = vld [vmem:[%s14 + $0xe0] sm:$0xff]
    %v1593 = vld [vmem:[%s14 + $0xe8] sm:$0xff]
    %v1594 = vld [vmem:[%s14 + $0xf0] sm:$0xff]
    %v1595 = vld [vmem:[%s14 + $0xf8] sm:$0xff]
    %v1596 = vld [vmem:[%s15] sm:$0x1]
    %v1598 = vlaneseq
    %v1599 = vshrl.u32 %v1598, 7
    %v1600 = vsub.s32 0, %v1599
    %v1601 = vrot.slane %v1596, %v1600
    %1603 = vmatprep.subr.mxu0 0.0
    %1604 = vmatpush1.msra.mxu0 %v1564
    %1605 = vmatprep.subr.mxu0 0.0
    %1606 = vmatpush1.msra.mxu0 %v1565
    %1607 = vmatprep.subr.mxu0 0.0
    %1608 = vmatpush1.msra.mxu0 %v1566
    %1609 = vmatprep.subr.mxu0 0.0
    %1610 = vmatpush1.msra.mxu0 %v1567
    %1611 = vmatprep.subr.mxu0 0.0
    %1612 = vmatpush1.msra.mxu0 %v1568
    %1613 = vmatprep.subr.mxu0 0.0
    %1614 = vmatpush1.msra.mxu0 %v1569
    %1615 = vmatprep.subr.mxu0 0.0
    %1616 = vmatpush1.msra.mxu0 %v1570
    %1617 = vmatprep.subr.mxu0 0.0
    %1618 = vmatpush1.msra.mxu0 %v1571
    %1619 = vmatprep.subr.mxu0 0.0
    %1620 = vmatpush1.msra.mxu0 %v1572
    %1621 = vmatprep.subr.mxu0 0.0
    %1622 = vmatpush1.msra.mxu0 %v1573
    %1623 = vmatprep.subr.mxu0 0.0
    %1624 = vmatpush1.msra.mxu0 %v1574
    %1625 = vmatprep.subr.mxu0 0.0
    %1626 = vmatpush1.msra.mxu0 %v1575
    %1627 = vmatprep.subr.mxu0 0.0
    %1628 = vmatpush1.msra.mxu0 %v1576
    %1629 = vmatprep.subr.mxu0 0.0
    %1630 = vmatpush1.msra.mxu0 %v1577
    %1631 = vmatprep.subr.mxu0 0.0
    %1632 = vmatpush1.msra.mxu0 %v1578
    %1633 = vmatprep.subr.mxu0 0.0
    %1634 = vmatpush1.msra.mxu0 %v1579
    %1635 = vmatprep.subr.mxu0 0.0
    %1636 = vmatpush1.msra.mxu0 %v1580
    %1637 = vmatprep.subr.mxu0 0.0
    %1638 = vmatpush1.msra.mxu0 %v1581
    %1639 = vmatprep.subr.mxu0 0.0
    %1640 = vmatpush1.msra.mxu0 %v1582
    %1641 = vmatprep.subr.mxu0 0.0
    %1642 = vmatpush1.msra.mxu0 %v1583
    %1643 = vmatprep.subr.mxu0 0.0
    %1644 = vmatpush1.msra.mxu0 %v1584
    %1645 = vmatprep.subr.mxu0 0.0
    %1646 = vmatpush1.msra.mxu0 %v1585
    %1647 = vmatprep.subr.mxu0 0.0
    %1648 = vmatpush1.msra.mxu0 %v1586
    %1649 = vmatprep.subr.mxu0 0.0
    %1650 = vmatpush1.msra.mxu0 %v1587
    %1651 = vmatprep.subr.mxu0 0.0
    %1652 = vmatpush1.msra.mxu0 %v1588
    %1653 = vmatprep.subr.mxu0 0.0
    %1654 = vmatpush1.msra.mxu0 %v1589
    %1655 = vmatprep.subr.mxu0 0.0
    %1656 = vmatpush1.msra.mxu0 %v1590
    %1657 = vmatprep.subr.mxu0 0.0
    %1658 = vmatpush1.msra.mxu0 %v1591
    %1659 = vmatprep.subr.mxu0 0.0
    %1660 = vmatpush1.msra.mxu0 %v1592
    %1661 = vmatprep.subr.mxu0 0.0
    %1662 = vmatpush1.msra.mxu0 %v1593
    %1663 = vmatprep.subr.mxu0 0.0
    %1664 = vmatpush1.msra.mxu0 %v1594
    %1665 = vmatprep.subr.mxu0 0.0
    %1666 = vmatpush1.msra.mxu0 %v1595
    %1667 = vmatprep.mubr.f32.mxu0 %v1561
    %1668 = vmatmul.mubr.f32.gmra.mrb[0].mxu0 %v1560
    %v1669 = vpop.f32.mrb[0].mxu0
    %v1670 = vadd.f32 %v1601, %v1669
    %v1671 = vpop.f32.mrb[0].mxu0
    %1672 = vmatprep.mubr.f32.mxu0 %v1563
    %1673 = vmatmul.mubr.f32.gmra.mrb[0].mxu0 %v1562
    %v1674 = vpop.f32.mrb[0].mxu0
    %v1675 = vadd.f32 %v1601, %v1674
    %v1676 = vpop.f32.mrb[0].mxu0
    %1677 = vdwg.mxu0
    %v1678 = vadd.f32 %v1455, %v1670
    %v1679 = vadd.f32 %v1456, %v1675
    %v1680 = vld [vmem:[%s16] sm:$0x1]
    %v1681 = vld [vmem:[%s17] sm:$0x1]
    %v1682 = vsel %vm74, %v1678, 0.0
    %1683 = vadd.xlane.f32.xlu0 %v1682
    %v1684 = vpop.xlane.xlu0 %1683
    %v1685 = vsel %vm74, %v1679, 0.0
    %1686 = vadd.xlane.f32.xlu0 %v1685
    %v1687 = vpop.xlane.xlu0 %1686
    %v1688 = vmul.f32 %v1684, %v1420
    %v1689 = vmul.f32 %v1687, %v1420
    %v1690 = vsub.f32 %v1678, %v1688
    %v1691 = vsub.f32 %v1679, %v1689
    %v1692 = vmul.f32 %v1690, %v1690
    %v1693 = vmul.f32 %v1691, %v1691
    %v1694 = vsel %vm74, %v1692, 0.0
    %1695 = vadd.xlane.f32.xlu0 %v1694
    %v1696 = vpop.xlane.xlu0 %1695
    %v1697 = vsel %vm74, %v1693, 0.0
    %1698 = vadd.xlane.f32.xlu0 %v1697
    %v1699 = vpop.xlane.xlu0 %1698
    %v1700 = vmul.f32 %v1696, %v1420
    %v1701 = vmul.f32 %v1699, %v1420
    %v1702 = vadd.f32 %v1700, 1e-06
    %v1703 = vadd.f32 %v1701, 1e-06
    %v1704 = vrsqrt.pop %v1702
    %v1705 = vrsqrt.pop %v1703
    %v1706 = vmul.f32 %v1690, %v1704
    %v1707 = vmul.f32 %v1691, %v1705
    %v1709 = vlaneseq
    %v1710 = vshrl.u32 %v1709, 7
    %v1711 = vsub.s32 0, %v1710
    %v1712 = vrot.slane %v1680, %v1711
    %v1714 = vmul.f32 %v1706, %v1712
    %v1715 = vmul.f32 %v1707, %v1712
    %v1717 = vlaneseq
    %v1718 = vshrl.u32 %v1717, 7
    %v1719 = vsub.s32 0, %v1718
    %v1720 = vrot.slane %v1681, %v1719
    %v1722 = vadd.f32 %v1714, %v1720
    %v1723 = vadd.f32 %v1715, %v1720
    %1724 = vst.msk [vmem:[#allocation2] sm:$0xff] %vm74, %v1722
    %1725 = vst.msk [vmem:[#allocation2 + $0x8] sm:$0xff] %vm74, %v1723
    // Predicated region
    $region74: #{tpu_custom_call.1} parent=1 // pred_check
      _
    $region75: #{tpu_custom_call.1} parent=1 // pred_check_branch
      %1727 = sbr.rel (0) target = $region77
    $region76: #{tpu_custom_call.1} parent=1 // pred_region
      %s1729 = ssub.s32 256, 256
      %1730 = vsyncadd [#allocation3], %s1729
      %s1731 = sshll.u32 [#allocation2], 4
      %s1732 = int_to_ptr.vmem [resolvable:$true] %s1731
      %1737 = dma.vmem_to_hbm [thread:$0]  %s1732, 256, %s18, [#allocation3], 128, 128, 8
    $region77: #{tpu_custom_call.1} parent=1 // pred_fallthru
      _
    // Predicated region
    $region78: #{tpu_custom_call.1} parent=1 // pred_check
      _
    $region79: #{tpu_custom_call.1} parent=1 // pred_check_branch
      %1739 = sbr.rel (0) target = $region81
    $region80: #{tpu_custom_call.1} parent=1 // pred_region
      %1740 = dma.done [#allocation3], 256
    $region81: #{tpu_custom_call.1} parent=1 // pred_fallthru
      _
    %1741 = vsyncpa [#allocation3], 1

</llo_original>
